<compile_context>
chip_gen: v7x
topology: tpu7x:2x2x1
jax: 0.10.0
libtpu: 0.0.40
codegen_flags: <defaults>
</compile_context>

<pallas_src>
import jax
import jax.numpy as jnp
from jax.experimental import pallas as pl
from jax.experimental.pallas import tpu as pltpu

NEG_SLOPE = 0.01   # F.leaky_relu default negative_slope
LN_EPS = 1e-5      # nn.LayerNorm default eps


def _leaky(x):
    return jnp.where(x >= 0, x, NEG_SLOPE * x)


def _layernorm2d(h, gamma, beta):
    # torch.nn.LayerNorm([rows, feat]): normalize jointly over the last two dims
    # of one sample (biased variance, eps inside the sqrt).
    mean = jnp.mean(h, axis=(0, 1), keepdims=True)
    var = jnp.mean(jnp.square(h - mean), axis=(0, 1), keepdims=True)
    return (h - mean) * jax.lax.rsqrt(var + LN_EPS) * gamma + beta


def nn5_kernel(x_ref, oh_ref,
               w1_ref, b1_ref, g1_ref, be1_ref,
               w2_ref, b2_ref, g2_ref, be2_ref,
               w3h_ref, w3o_ref, b3_ref,
               o_ref, flat_ref):
    # NOTE: nn.Dropout(0.5) layers are identity here (eval-mode semantics).
    batch, rows, _ = x_ref.shape
    feat2 = w2_ref.shape[1]          # 128 (fc2 output width)

    w1 = w1_ref[...]; b1 = b1_ref[...]; g1 = g1_ref[...]; be1 = be1_ref[...]
    w2 = w2_ref[...]; b2 = b2_ref[...]; g2 = g2_ref[...]; be2 = be2_ref[...]

    # fc1/fc2 + per-sample LayerNorm + LeakyReLU; the normalized (rows, 128)
    # activations are written row-major into a lane-contiguous flat slab so the
    # flatten+hstack never materialize as separate HBM tensors.
    for b in range(batch):
        h = jnp.dot(x_ref[b], w1, preferred_element_type=jnp.float32) + b1
        h = _leaky(_layernorm2d(h, g1, be1))                      # (rows, 256)
        h = jnp.dot(h, w2, preferred_element_type=jnp.float32) + b2
        h = _leaky(_layernorm2d(h, g2, be2))                      # (rows, 128)
        for r in range(rows):
            # flat[b, r*128 + c] = h[r, c]  (row-major flatten, lane-aligned)
            flat_ref[b:b + 1, r * feat2:(r + 1) * feat2] = h[r:r + 1, :]

    # fc3 as ONE K = rows*128 matmul on the lane-dense slab, then the tiny
    # one-hot contribution and bias (both off the accumulation critical path).
    flat = flat_ref[...]                                          # (B, rows*128)
    acc = jnp.dot(flat, w3h_ref[...], preferred_element_type=jnp.float32)
    acc = acc + jnp.dot(oh_ref[...], w3o_ref[...],
                        preferred_element_type=jnp.float32)
    o_ref[...] = acc + b3_ref[...]                                # (B, out_pad)


def nn5_forward(params, x, one_hot, *, training=False):
    if training:
        # TODO(synk): training-mode Dropout(0.5) (RNG masking) not implemented.
        raise NotImplementedError("NN5 Pallas kernel implements eval-mode forward only.")

    B, rows, in_dim = x.shape
    oh_dim = one_hot.shape[1]
    out_dim = params["b3"].shape[1]

    # Zero-pad the fc3 lane dimension to a multiple of 128 (lane-dense output
    # stores + dense MXU tiles); padded lanes stay exactly zero.
    out_pad = ((out_dim + 127) // 128) * 128
    pad = out_pad - out_dim
    w3h_p = jnp.pad(params["w3h"], ((0, 0), (0, pad)))
    w3o_p = jnp.pad(params["w3o"], ((0, 0), (0, pad)))
    b3_p = jnp.pad(params["b3"], ((0, 0), (0, pad)))

    def full_spec(arr):
        nd = arr.ndim
        return pl.BlockSpec(arr.shape, lambda i, _nd=nd: (0,) * _nd)

    args = (x, one_hot,
            params["w1"], params["b1"], params["g1"], params["be1"],
            params["w2"], params["b2"], params["g2"], params["be2"],
            w3h_p, w3o_p, b3_p)

    grid_spec = pltpu.PrefetchScalarGridSpec(
        num_scalar_prefetch=0,
        grid=(1,),                                   # single step: whole batch at once
        in_specs=[full_spec(a) for a in args],
        out_specs=pl.BlockSpec((B, out_pad), lambda i: (0, 0)),
        scratch_shapes=[pltpu.VMEM((B, rows * 128), jnp.float32)],  # flatten slab
    )
    out = pl.pallas_call(
        nn5_kernel,
        out_shape=jax.ShapeDtypeStruct((B, out_pad), jnp.float32),
        grid_spec=grid_spec,
        compiler_params=pltpu.CompilerParams(
            dimension_semantics=("arbitrary",)),
    )(*args)
    return out[:, :out_dim]


# -----------------------------------------------------------------------------
# Deterministic synthetic parameters (PyTorch-default-style init) + reference.
# -----------------------------------------------------------------------------
def _init_linear(key, fan_in, fan_out):
    kw, kb = jax.random.split(key)
    bound = 1.0 / float(fan_in) ** 0.5
    w = jax.random.uniform(kw, (fan_in, fan_out), jnp.float32, -bound, bound)
    b = jax.random.uniform(kb, (1, fan_out), jnp.float32, -bound, bound)
    return w, b


def init_params(key, input_dim, rows, output):
    k1, k2, k3 = jax.random.split(key, 3)
    p = {}
    p["w1"], p["b1"] = _init_linear(k1, input_dim, 256)
    p["g1"] = jnp.ones((rows, 256), jnp.float32)      # LayerNorm weight init
    p["be1"] = jnp.zeros((rows, 256), jnp.float32)    # LayerNorm bias init
    p["w2"], p["b2"] = _init_linear(k2, 256, 128)
    p["g2"] = jnp.ones((rows, 128), jnp.float32)
    p["be2"] = jnp.zeros((rows, 128), jnp.float32)
    w3, p["b3"] = _init_linear(k3, 128 * rows + 20, output)
    p["w3h"] = w3[:128 * rows]    # fc3 rows matching flatten(out2)
    p["w3o"] = w3[128 * rows:]    # fc3 rows matching one_hot (hstack order)
    return p


def nn5_reference(params, x, one_hot):
    def ln(h, g, b):
        m = jnp.mean(h, axis=(1, 2), keepdims=True)
        v = jnp.mean(jnp.square(h - m), axis=(1, 2), keepdims=True)
        return (h - m) * jax.lax.rsqrt(v + LN_EPS) * g + b

    h = jnp.einsum("brd,df->brf", x, params["w1"]) + params["b1"]
    h = _leaky(ln(h, params["g1"], params["be1"]))
    h = jnp.einsum("brd,df->brf", h, params["w2"]) + params["b2"]
    h = _leaky(ln(h, params["g2"], params["be2"]))
    flat = h.reshape(h.shape[0], -1)
    cat = jnp.concatenate([flat, one_hot], axis=1)
    w3 = jnp.concatenate([params["w3h"], params["w3o"]], axis=0)
    return cat @ w3 + params["b3"]


if __name__ == "__main__":
    key = jax.random.PRNGKey(0)
    k_param, k_x, k_oh = jax.random.split(key, 3)

    B, rows, input_dim, output = 2, 8, 32, 5
    params = init_params(k_param, input_dim, rows, output)

    x = jax.random.normal(k_x, (B, rows, input_dim), jnp.float32)
    labels = jax.random.randint(k_oh, (B,), 0, 20)
    one_hot = jax.nn.one_hot(labels, 20, dtype=jnp.float32)

    out = nn5_forward(params, x, one_hot)
    out = jax.block_until_ready(out)

    assert out.shape == (B, output), out.shape
    assert bool(jnp.all(jnp.isfinite(out)))

    ref = nn5_reference(params, x, one_hot)
    assert bool(jnp.allclose(out, ref, rtol=2e-3, atol=2e-3)), (out, ref)

    print("KERNEL_OK")
</pallas_src>

<mosaic_0001>
module attributes {stable_mosaic.version = 11 : i64} {
  func.func @nn5_kernel(%arg0: i32, %arg1: memref<2x8x32xf32, #tpu.memory_space<vmem>>, %arg2: memref<2x20xf32, #tpu.memory_space<vmem>>, %arg3: memref<32x256xf32, #tpu.memory_space<vmem>>, %arg4: memref<1x256xf32, #tpu.memory_space<vmem>>, %arg5: memref<8x256xf32, #tpu.memory_space<vmem>>, %arg6: memref<8x256xf32, #tpu.memory_space<vmem>>, %arg7: memref<256x128xf32, #tpu.memory_space<vmem>>, %arg8: memref<1x128xf32, #tpu.memory_space<vmem>>, %arg9: memref<8x128xf32, #tpu.memory_space<vmem>>, %arg10: memref<8x128xf32, #tpu.memory_space<vmem>>, %arg11: memref<1024x128xf32, #tpu.memory_space<vmem>>, %arg12: memref<20x128xf32, #tpu.memory_space<vmem>>, %arg13: memref<1x128xf32, #tpu.memory_space<vmem>>, %arg14: memref<2x128xf32, #tpu.memory_space<vmem>>, %arg15: memref<2x1024xf32, #tpu.memory_space<vmem>>) attributes {dimension_semantics = [#tpu.dimension_semantics<arbitrary>], iteration_bounds = array<i64: 1>, scalar_prefetch = 0 : i64, scratch_operands = 1 : i64, tpu.core_type = #tpu.core_type<tc>, window_params = [{pipeline_mode = #tpu.pipeline_mode<synchronous>, transform_indices = @transform_0, window_bounds = array<i64: 2, 8, 32>}, {pipeline_mode = #tpu.pipeline_mode<synchronous>, transform_indices = @transform_1, window_bounds = array<i64: 2, 20>}, {pipeline_mode = #tpu.pipeline_mode<synchronous>, transform_indices = @transform_2, window_bounds = array<i64: 32, 256>}, {pipeline_mode = #tpu.pipeline_mode<synchronous>, transform_indices = @transform_3, window_bounds = array<i64: 1, 256>}, {pipeline_mode = #tpu.pipeline_mode<synchronous>, transform_indices = @transform_4, window_bounds = array<i64: 8, 256>}, {pipeline_mode = #tpu.pipeline_mode<synchronous>, transform_indices = @transform_5, window_bounds = array<i64: 8, 256>}, {pipeline_mode = #tpu.pipeline_mode<synchronous>, transform_indices = @transform_6, window_bounds = array<i64: 256, 128>}, {pipeline_mode = #tpu.pipeline_mode<synchronous>, transform_indices = @transform_7, window_bounds = array<i64: 1, 128>}, {pipeline_mode = #tpu.pipeline_mode<synchronous>, transform_indices = @transform_8, window_bounds = array<i64: 8, 128>}, {pipeline_mode = #tpu.pipeline_mode<synchronous>, transform_indices = @transform_9, window_bounds = array<i64: 8, 128>}, {pipeline_mode = #tpu.pipeline_mode<synchronous>, transform_indices = @transform_10, window_bounds = array<i64: 1024, 128>}, {pipeline_mode = #tpu.pipeline_mode<synchronous>, transform_indices = @transform_11, window_bounds = array<i64: 20, 128>}, {pipeline_mode = #tpu.pipeline_mode<synchronous>, transform_indices = @transform_12, window_bounds = array<i64: 1, 128>}, {pipeline_mode = #tpu.pipeline_mode<synchronous>, transform_indices = @transform_13, window_bounds = array<i64: 2, 128>}]} {
    %c0 = arith.constant 0 : index
    %c0_0 = arith.constant 0 : index
    %0 = vector.load %arg3[%c0, %c0_0] : memref<32x256xf32, #tpu.memory_space<vmem>>, vector<32x256xf32>
    %c0_1 = arith.constant 0 : index
    %c0_2 = arith.constant 0 : index
    %1 = vector.load %arg4[%c0_1, %c0_2] : memref<1x256xf32, #tpu.memory_space<vmem>>, vector<1x256xf32>
    %c0_3 = arith.constant 0 : index
    %c0_4 = arith.constant 0 : index
    %2 = vector.load %arg5[%c0_3, %c0_4] : memref<8x256xf32, #tpu.memory_space<vmem>>, vector<8x256xf32>
    %c0_5 = arith.constant 0 : index
    %c0_6 = arith.constant 0 : index
    %3 = vector.load %arg6[%c0_5, %c0_6] : memref<8x256xf32, #tpu.memory_space<vmem>>, vector<8x256xf32>
    %c0_7 = arith.constant 0 : index
    %c0_8 = arith.constant 0 : index
    %4 = vector.load %arg7[%c0_7, %c0_8] : memref<256x128xf32, #tpu.memory_space<vmem>>, vector<256x128xf32>
    %c0_9 = arith.constant 0 : index
    %c0_10 = arith.constant 0 : index
    %5 = vector.load %arg8[%c0_9, %c0_10] : memref<1x128xf32, #tpu.memory_space<vmem>>, vector<1x128xf32>
    %c0_11 = arith.constant 0 : index
    %c0_12 = arith.constant 0 : index
    %6 = vector.load %arg9[%c0_11, %c0_12] : memref<8x128xf32, #tpu.memory_space<vmem>>, vector<8x128xf32>
    %c0_13 = arith.constant 0 : index
    %c0_14 = arith.constant 0 : index
    %7 = vector.load %arg10[%c0_13, %c0_14] : memref<8x128xf32, #tpu.memory_space<vmem>>, vector<8x128xf32>
    %c0_15 = arith.constant 0 : index
    %c0_16 = arith.constant 0 : index
    %c0_17 = arith.constant 0 : index
    %8 = vector.load %arg1[%c0_15, %c0_16, %c0_17] : memref<2x8x32xf32, #tpu.memory_space<vmem>>, vector<1x8x32xf32>
    %9 = vector.shape_cast %8 : vector<1x8x32xf32> to vector<8x32xf32>
    %cst = arith.constant dense<0.000000e+00> : vector<8x256xf32>
    %10 = tpu.matmul %9, %0, %cst {dimension_numbers = #tpu.dot_dimension_numbers<[1], [0], [0], [1], [0, 0, 1, 1], [], []>} : vector<8x32xf32>, vector<32x256xf32>, vector<8x256xf32> -> vector<8x256xf32>
    %11 = vector.broadcast %1 : vector<1x256xf32> to vector<8x256xf32>
    %12 = arith.addf %10, %11 : vector<8x256xf32>
    %13 = vector.shape_cast %12 : vector<8x256xf32> to vector<1x8x256xf32>
    %cst_18 = arith.constant dense<0.000000e+00> : vector<1xf32>
    %14 = vector.multi_reduction <add>, %13, %cst_18 [1, 2] : vector<1x8x256xf32> to vector<1xf32>
    %15 = vector.shape_cast %14 : vector<1xf32> to vector<1x1x1xf32>
    %16 = vector.extract %15[0, 0, 0] : f32 from vector<1x1x1xf32>
    %17 = vector.broadcast %16 : f32 to vector<1x1xf32>
    %cst_19 = arith.constant 2.048000e+03 : f32
    %18 = vector.broadcast %cst_19 : f32 to vector<1x1xf32>
    %19 = arith.divf %17, %18 : vector<1x1xf32>
    %20 = vector.broadcast %19 : vector<1x1xf32> to vector<8x256xf32>
    %21 = arith.subf %12, %20 : vector<8x256xf32>
    %22 = arith.mulf %21, %21 : vector<8x256xf32>
    %23 = vector.shape_cast %22 : vector<8x256xf32> to vector<1x8x256xf32>
    %cst_20 = arith.constant dense<0.000000e+00> : vector<1xf32>
    %24 = vector.multi_reduction <add>, %23, %cst_20 [1, 2] : vector<1x8x256xf32> to vector<1xf32>
    %25 = vector.shape_cast %24 : vector<1xf32> to vector<1x1x1xf32>
    %26 = vector.extract %25[0, 0, 0] : f32 from vector<1x1x1xf32>
    %27 = vector.broadcast %26 : f32 to vector<1x1xf32>
    %cst_21 = arith.constant 2.048000e+03 : f32
    %28 = vector.broadcast %cst_21 : f32 to vector<1x1xf32>
    %29 = arith.divf %27, %28 : vector<1x1xf32>
    %30 = vector.broadcast %19 : vector<1x1xf32> to vector<8x256xf32>
    %31 = arith.subf %12, %30 : vector<8x256xf32>
    %cst_22 = arith.constant 9.99999974E-6 : f32
    %32 = vector.broadcast %cst_22 : f32 to vector<1x1xf32>
    %33 = arith.addf %29, %32 : vector<1x1xf32>
    %34 = math.rsqrt %33 : vector<1x1xf32>
    %35 = vector.broadcast %34 : vector<1x1xf32> to vector<8x256xf32>
    %36 = arith.mulf %31, %35 : vector<8x256xf32>
    %37 = arith.mulf %36, %2 : vector<8x256xf32>
    %38 = arith.addf %37, %3 : vector<8x256xf32>
    %cst_23 = arith.constant 0.000000e+00 : f32
    %39 = vector.broadcast %cst_23 : f32 to vector<8x256xf32>
    %40 = arith.cmpf oge, %38, %39 : vector<8x256xf32>
    %cst_24 = arith.constant 0.00999999977 : f32
    %41 = vector.broadcast %cst_24 : f32 to vector<8x256xf32>
    %42 = arith.mulf %41, %38 : vector<8x256xf32>
    %43 = arith.select %40, %38, %42 : vector<8x256xi1>, vector<8x256xf32>
    %cst_25 = arith.constant dense<0.000000e+00> : vector<8x128xf32>
    %44 = tpu.matmul %43, %4, %cst_25 {dimension_numbers = #tpu.dot_dimension_numbers<[1], [0], [0], [1], [0, 0, 1, 1], [], []>} : vector<8x256xf32>, vector<256x128xf32>, vector<8x128xf32> -> vector<8x128xf32>
    %45 = vector.broadcast %5 : vector<1x128xf32> to vector<8x128xf32>
    %46 = arith.addf %44, %45 : vector<8x128xf32>
    %47 = vector.shape_cast %46 : vector<8x128xf32> to vector<1x8x128xf32>
    %cst_26 = arith.constant dense<0.000000e+00> : vector<1xf32>
    %48 = vector.multi_reduction <add>, %47, %cst_26 [1, 2] : vector<1x8x128xf32> to vector<1xf32>
    %49 = vector.shape_cast %48 : vector<1xf32> to vector<1x1x1xf32>
    %50 = vector.extract %49[0, 0, 0] : f32 from vector<1x1x1xf32>
    %51 = vector.broadcast %50 : f32 to vector<1x1xf32>
    %cst_27 = arith.constant 1.024000e+03 : f32
    %52 = vector.broadcast %cst_27 : f32 to vector<1x1xf32>
    %53 = arith.divf %51, %52 : vector<1x1xf32>
    %54 = vector.broadcast %53 : vector<1x1xf32> to vector<8x128xf32>
    %55 = arith.subf %46, %54 : vector<8x128xf32>
    %56 = arith.mulf %55, %55 : vector<8x128xf32>
    %57 = vector.shape_cast %56 : vector<8x128xf32> to vector<1x8x128xf32>
    %cst_28 = arith.constant dense<0.000000e+00> : vector<1xf32>
    %58 = vector.multi_reduction <add>, %57, %cst_28 [1, 2] : vector<1x8x128xf32> to vector<1xf32>
    %59 = vector.shape_cast %58 : vector<1xf32> to vector<1x1x1xf32>
    %60 = vector.extract %59[0, 0, 0] : f32 from vector<1x1x1xf32>
    %61 = vector.broadcast %60 : f32 to vector<1x1xf32>
    %cst_29 = arith.constant 1.024000e+03 : f32
    %62 = vector.broadcast %cst_29 : f32 to vector<1x1xf32>
    %63 = arith.divf %61, %62 : vector<1x1xf32>
    %64 = vector.broadcast %53 : vector<1x1xf32> to vector<8x128xf32>
    %65 = arith.subf %46, %64 : vector<8x128xf32>
    %cst_30 = arith.constant 9.99999974E-6 : f32
    %66 = vector.broadcast %cst_30 : f32 to vector<1x1xf32>
    %67 = arith.addf %63, %66 : vector<1x1xf32>
    %68 = math.rsqrt %67 : vector<1x1xf32>
    %69 = vector.broadcast %68 : vector<1x1xf32> to vector<8x128xf32>
    %70 = arith.mulf %65, %69 : vector<8x128xf32>
    %71 = arith.mulf %70, %6 : vector<8x128xf32>
    %72 = arith.addf %71, %7 : vector<8x128xf32>
    %cst_31 = arith.constant 0.000000e+00 : f32
    %73 = vector.broadcast %cst_31 : f32 to vector<8x128xf32>
    %74 = arith.cmpf oge, %72, %73 : vector<8x128xf32>
    %cst_32 = arith.constant 0.00999999977 : f32
    %75 = vector.broadcast %cst_32 : f32 to vector<8x128xf32>
    %76 = arith.mulf %75, %72 : vector<8x128xf32>
    %77 = arith.select %74, %72, %76 : vector<8x128xi1>, vector<8x128xf32>
    %78 = vector.extract_strided_slice %77 {offsets = [0, 0], sizes = [1, 128], strides = [1, 1]} : vector<8x128xf32> to vector<1x128xf32>
    %c0_33 = arith.constant 0 : index
    %c0_34 = arith.constant 0 : index
    %79 = vector.load %arg15[%c0_33, %c0_34] : memref<2x1024xf32, #tpu.memory_space<vmem>>, vector<1x128xf32>
    tpu.vector_store %arg15[%c0_33, %c0_34], %78 {strides = array<i32>} : memref<2x1024xf32, #tpu.memory_space<vmem>>, vector<1x128xf32>,
    %80 = vector.extract_strided_slice %77 {offsets = [1, 0], sizes = [1, 128], strides = [1, 1]} : vector<8x128xf32> to vector<1x128xf32>
    %c0_35 = arith.constant 0 : index
    %c128 = arith.constant 128 : index
    %81 = vector.load %arg15[%c0_35, %c128] : memref<2x1024xf32, #tpu.memory_space<vmem>>, vector<1x128xf32>
    tpu.vector_store %arg15[%c0_35, %c128], %80 {strides = array<i32>} : memref<2x1024xf32, #tpu.memory_space<vmem>>, vector<1x128xf32>,
    %82 = vector.extract_strided_slice %77 {offsets = [2, 0], sizes = [1, 128], strides = [1, 1]} : vector<8x128xf32> to vector<1x128xf32>
    %c0_36 = arith.constant 0 : index
    %c256 = arith.constant 256 : index
    %83 = vector.load %arg15[%c0_36, %c256] : memref<2x1024xf32, #tpu.memory_space<vmem>>, vector<1x128xf32>
    tpu.vector_store %arg15[%c0_36, %c256], %82 {strides = array<i32>} : memref<2x1024xf32, #tpu.memory_space<vmem>>, vector<1x128xf32>,
    %84 = vector.extract_strided_slice %77 {offsets = [3, 0], sizes = [1, 128], strides = [1, 1]} : vector<8x128xf32> to vector<1x128xf32>
    %c0_37 = arith.constant 0 : index
    %c384 = arith.constant 384 : index
    %85 = vector.load %arg15[%c0_37, %c384] : memref<2x1024xf32, #tpu.memory_space<vmem>>, vector<1x128xf32>
    tpu.vector_store %arg15[%c0_37, %c384], %84 {strides = array<i32>} : memref<2x1024xf32, #tpu.memory_space<vmem>>, vector<1x128xf32>,
    %86 = vector.extract_strided_slice %77 {offsets = [4, 0], sizes = [1, 128], strides = [1, 1]} : vector<8x128xf32> to vector<1x128xf32>
    %c0_38 = arith.constant 0 : index
    %c512 = arith.constant 512 : index
    %87 = vector.load %arg15[%c0_38, %c512] : memref<2x1024xf32, #tpu.memory_space<vmem>>, vector<1x128xf32>
    tpu.vector_store %arg15[%c0_38, %c512], %86 {strides = array<i32>} : memref<2x1024xf32, #tpu.memory_space<vmem>>, vector<1x128xf32>,
    %88 = vector.extract_strided_slice %77 {offsets = [5, 0], sizes = [1, 128], strides = [1, 1]} : vector<8x128xf32> to vector<1x128xf32>
    %c0_39 = arith.constant 0 : index
    %c640 = arith.constant 640 : index
    %89 = vector.load %arg15[%c0_39, %c640] : memref<2x1024xf32, #tpu.memory_space<vmem>>, vector<1x128xf32>
    tpu.vector_store %arg15[%c0_39, %c640], %88 {strides = array<i32>} : memref<2x1024xf32, #tpu.memory_space<vmem>>, vector<1x128xf32>,
    %90 = vector.extract_strided_slice %77 {offsets = [6, 0], sizes = [1, 128], strides = [1, 1]} : vector<8x128xf32> to vector<1x128xf32>
    %c0_40 = arith.constant 0 : index
    %c768 = arith.constant 768 : index
    %91 = vector.load %arg15[%c0_40, %c768] : memref<2x1024xf32, #tpu.memory_space<vmem>>, vector<1x128xf32>
    tpu.vector_store %arg15[%c0_40, %c768], %90 {strides = array<i32>} : memref<2x1024xf32, #tpu.memory_space<vmem>>, vector<1x128xf32>,
    %92 = vector.extract_strided_slice %77 {offsets = [7, 0], sizes = [1, 128], strides = [1, 1]} : vector<8x128xf32> to vector<1x128xf32>
    %c0_41 = arith.constant 0 : index
    %c896 = arith.constant 896 : index
    %93 = vector.load %arg15[%c0_41, %c896] : memref<2x1024xf32, #tpu.memory_space<vmem>>, vector<1x128xf32>
    tpu.vector_store %arg15[%c0_41, %c896], %92 {strides = array<i32>} : memref<2x1024xf32, #tpu.memory_space<vmem>>, vector<1x128xf32>,
    %c1 = arith.constant 1 : index
    %c0_42 = arith.constant 0 : index
    %c0_43 = arith.constant 0 : index
    %94 = vector.load %arg1[%c1, %c0_42, %c0_43] : memref<2x8x32xf32, #tpu.memory_space<vmem>>, vector<1x8x32xf32>
    %95 = vector.shape_cast %94 : vector<1x8x32xf32> to vector<8x32xf32>
    %cst_44 = arith.constant dense<0.000000e+00> : vector<8x256xf32>
    %96 = tpu.matmul %95, %0, %cst_44 {dimension_numbers = #tpu.dot_dimension_numbers<[1], [0], [0], [1], [0, 0, 1, 1], [], []>} : vector<8x32xf32>, vector<32x256xf32>, vector<8x256xf32> -> vector<8x256xf32>
    %97 = vector.broadcast %1 : vector<1x256xf32> to vector<8x256xf32>
    %98 = arith.addf %96, %97 : vector<8x256xf32>
    %99 = vector.shape_cast %98 : vector<8x256xf32> to vector<1x8x256xf32>
    %cst_45 = arith.constant dense<0.000000e+00> : vector<1xf32>
    %100 = vector.multi_reduction <add>, %99, %cst_45 [1, 2] : vector<1x8x256xf32> to vector<1xf32>
    %101 = vector.shape_cast %100 : vector<1xf32> to vector<1x1x1xf32>
    %102 = vector.extract %101[0, 0, 0] : f32 from vector<1x1x1xf32>
    %103 = vector.broadcast %102 : f32 to vector<1x1xf32>
    %cst_46 = arith.constant 2.048000e+03 : f32
    %104 = vector.broadcast %cst_46 : f32 to vector<1x1xf32>
    %105 = arith.divf %103, %104 : vector<1x1xf32>
    %106 = vector.broadcast %105 : vector<1x1xf32> to vector<8x256xf32>
    %107 = arith.subf %98, %106 : vector<8x256xf32>
    %108 = arith.mulf %107, %107 : vector<8x256xf32>
    %109 = vector.shape_cast %108 : vector<8x256xf32> to vector<1x8x256xf32>
    %cst_47 = arith.constant dense<0.000000e+00> : vector<1xf32>
    %110 = vector.multi_reduction <add>, %109, %cst_47 [1, 2] : vector<1x8x256xf32> to vector<1xf32>
    %111 = vector.shape_cast %110 : vector<1xf32> to vector<1x1x1xf32>
    %112 = vector.extract %111[0, 0, 0] : f32 from vector<1x1x1xf32>
    %113 = vector.broadcast %112 : f32 to vector<1x1xf32>
    %cst_48 = arith.constant 2.048000e+03 : f32
    %114 = vector.broadcast %cst_48 : f32 to vector<1x1xf32>
    %115 = arith.divf %113, %114 : vector<1x1xf32>
    %116 = vector.broadcast %105 : vector<1x1xf32> to vector<8x256xf32>
    %117 = arith.subf %98, %116 : vector<8x256xf32>
    %cst_49 = arith.constant 9.99999974E-6 : f32
    %118 = vector.broadcast %cst_49 : f32 to vector<1x1xf32>
    %119 = arith.addf %115, %118 : vector<1x1xf32>
    %120 = math.rsqrt %119 : vector<1x1xf32>
    %121 = vector.broadcast %120 : vector<1x1xf32> to vector<8x256xf32>
    %122 = arith.mulf %117, %121 : vector<8x256xf32>
    %123 = arith.mulf %122, %2 : vector<8x256xf32>
    %124 = arith.addf %123, %3 : vector<8x256xf32>
    %cst_50 = arith.constant 0.000000e+00 : f32
    %125 = vector.broadcast %cst_50 : f32 to vector<8x256xf32>
    %126 = arith.cmpf oge, %124, %125 : vector<8x256xf32>
    %cst_51 = arith.constant 0.00999999977 : f32
    %127 = vector.broadcast %cst_51 : f32 to vector<8x256xf32>
    %128 = arith.mulf %127, %124 : vector<8x256xf32>
    %129 = arith.select %126, %124, %128 : vector<8x256xi1>, vector<8x256xf32>
    %cst_52 = arith.constant dense<0.000000e+00> : vector<8x128xf32>
    %130 = tpu.matmul %129, %4, %cst_52 {dimension_numbers = #tpu.dot_dimension_numbers<[1], [0], [0], [1], [0, 0, 1, 1], [], []>} : vector<8x256xf32>, vector<256x128xf32>, vector<8x128xf32> -> vector<8x128xf32>
    %131 = vector.broadcast %5 : vector<1x128xf32> to vector<8x128xf32>
    %132 = arith.addf %130, %131 : vector<8x128xf32>
    %133 = vector.shape_cast %132 : vector<8x128xf32> to vector<1x8x128xf32>
    %cst_53 = arith.constant dense<0.000000e+00> : vector<1xf32>
    %134 = vector.multi_reduction <add>, %133, %cst_53 [1, 2] : vector<1x8x128xf32> to vector<1xf32>
    %135 = vector.shape_cast %134 : vector<1xf32> to vector<1x1x1xf32>
    %136 = vector.extract %135[0, 0, 0] : f32 from vector<1x1x1xf32>
    %137 = vector.broadcast %136 : f32 to vector<1x1xf32>
    %cst_54 = arith.constant 1.024000e+03 : f32
    %138 = vector.broadcast %cst_54 : f32 to vector<1x1xf32>
    %139 = arith.divf %137, %138 : vector<1x1xf32>
    %140 = vector.broadcast %139 : vector<1x1xf32> to vector<8x128xf32>
    %141 = arith.subf %132, %140 : vector<8x128xf32>
    %142 = arith.mulf %141, %141 : vector<8x128xf32>
    %143 = vector.shape_cast %142 : vector<8x128xf32> to vector<1x8x128xf32>
    %cst_55 = arith.constant dense<0.000000e+00> : vector<1xf32>
    %144 = vector.multi_reduction <add>, %143, %cst_55 [1, 2] : vector<1x8x128xf32> to vector<1xf32>
    %145 = vector.shape_cast %144 : vector<1xf32> to vector<1x1x1xf32>
    %146 = vector.extract %145[0, 0, 0] : f32 from vector<1x1x1xf32>
    %147 = vector.broadcast %146 : f32 to vector<1x1xf32>
    %cst_56 = arith.constant 1.024000e+03 : f32
    %148 = vector.broadcast %cst_56 : f32 to vector<1x1xf32>
    %149 = arith.divf %147, %148 : vector<1x1xf32>
    %150 = vector.broadcast %139 : vector<1x1xf32> to vector<8x128xf32>
    %151 = arith.subf %132, %150 : vector<8x128xf32>
    %cst_57 = arith.constant 9.99999974E-6 : f32
    %152 = vector.broadcast %cst_57 : f32 to vector<1x1xf32>
    %153 = arith.addf %149, %152 : vector<1x1xf32>
    %154 = math.rsqrt %153 : vector<1x1xf32>
    %155 = vector.broadcast %154 : vector<1x1xf32> to vector<8x128xf32>
    %156 = arith.mulf %151, %155 : vector<8x128xf32>
    %157 = arith.mulf %156, %6 : vector<8x128xf32>
    %158 = arith.addf %157, %7 : vector<8x128xf32>
    %cst_58 = arith.constant 0.000000e+00 : f32
    %159 = vector.broadcast %cst_58 : f32 to vector<8x128xf32>
    %160 = arith.cmpf oge, %158, %159 : vector<8x128xf32>
    %cst_59 = arith.constant 0.00999999977 : f32
    %161 = vector.broadcast %cst_59 : f32 to vector<8x128xf32>
    %162 = arith.mulf %161, %158 : vector<8x128xf32>
    %163 = arith.select %160, %158, %162 : vector<8x128xi1>, vector<8x128xf32>
    %164 = vector.extract_strided_slice %163 {offsets = [0, 0], sizes = [1, 128], strides = [1, 1]} : vector<8x128xf32> to vector<1x128xf32>
    %c1_60 = arith.constant 1 : index
    %c0_61 = arith.constant 0 : index
    %165 = vector.load %arg15[%c1_60, %c0_61] : memref<2x1024xf32, #tpu.memory_space<vmem>>, vector<1x128xf32>
    tpu.vector_store %arg15[%c1_60, %c0_61], %164 {strides = array<i32>} : memref<2x1024xf32, #tpu.memory_space<vmem>>, vector<1x128xf32>,
    %166 = vector.extract_strided_slice %163 {offsets = [1, 0], sizes = [1, 128], strides = [1, 1]} : vector<8x128xf32> to vector<1x128xf32>
    %c1_62 = arith.constant 1 : index
    %c128_63 = arith.constant 128 : index
    %167 = vector.load %arg15[%c1_62, %c128_63] : memref<2x1024xf32, #tpu.memory_space<vmem>>, vector<1x128xf32>
    tpu.vector_store %arg15[%c1_62, %c128_63], %166 {strides = array<i32>} : memref<2x1024xf32, #tpu.memory_space<vmem>>, vector<1x128xf32>,
    %168 = vector.extract_strided_slice %163 {offsets = [2, 0], sizes = [1, 128], strides = [1, 1]} : vector<8x128xf32> to vector<1x128xf32>
    %c1_64 = arith.constant 1 : index
    %c256_65 = arith.constant 256 : index
    %169 = vector.load %arg15[%c1_64, %c256_65] : memref<2x1024xf32, #tpu.memory_space<vmem>>, vector<1x128xf32>
    tpu.vector_store %arg15[%c1_64, %c256_65], %168 {strides = array<i32>} : memref<2x1024xf32, #tpu.memory_space<vmem>>, vector<1x128xf32>,
    %170 = vector.extract_strided_slice %163 {offsets = [3, 0], sizes = [1, 128], strides = [1, 1]} : vector<8x128xf32> to vector<1x128xf32>
    %c1_66 = arith.constant 1 : index
    %c384_67 = arith.constant 384 : index
    %171 = vector.load %arg15[%c1_66, %c384_67] : memref<2x1024xf32, #tpu.memory_space<vmem>>, vector<1x128xf32>
    tpu.vector_store %arg15[%c1_66, %c384_67], %170 {strides = array<i32>} : memref<2x1024xf32, #tpu.memory_space<vmem>>, vector<1x128xf32>,
    %172 = vector.extract_strided_slice %163 {offsets = [4, 0], sizes = [1, 128], strides = [1, 1]} : vector<8x128xf32> to vector<1x128xf32>
    %c1_68 = arith.constant 1 : index
    %c512_69 = arith.constant 512 : index
    %173 = vector.load %arg15[%c1_68, %c512_69] : memref<2x1024xf32, #tpu.memory_space<vmem>>, vector<1x128xf32>
    tpu.vector_store %arg15[%c1_68, %c512_69], %172 {strides = array<i32>} : memref<2x1024xf32, #tpu.memory_space<vmem>>, vector<1x128xf32>,
    %174 = vector.extract_strided_slice %163 {offsets = [5, 0], sizes = [1, 128], strides = [1, 1]} : vector<8x128xf32> to vector<1x128xf32>
    %c1_70 = arith.constant 1 : index
    %c640_71 = arith.constant 640 : index
    %175 = vector.load %arg15[%c1_70, %c640_71] : memref<2x1024xf32, #tpu.memory_space<vmem>>, vector<1x128xf32>
    tpu.vector_store %arg15[%c1_70, %c640_71], %174 {strides = array<i32>} : memref<2x1024xf32, #tpu.memory_space<vmem>>, vector<1x128xf32>,
    %176 = vector.extract_strided_slice %163 {offsets = [6, 0], sizes = [1, 128], strides = [1, 1]} : vector<8x128xf32> to vector<1x128xf32>
    %c1_72 = arith.constant 1 : index
    %c768_73 = arith.constant 768 : index
    %177 = vector.load %arg15[%c1_72, %c768_73] : memref<2x1024xf32, #tpu.memory_space<vmem>>, vector<1x128xf32>
    tpu.vector_store %arg15[%c1_72, %c768_73], %176 {strides = array<i32>} : memref<2x1024xf32, #tpu.memory_space<vmem>>, vector<1x128xf32>,
    %178 = vector.extract_strided_slice %163 {offsets = [7, 0], sizes = [1, 128], strides = [1, 1]} : vector<8x128xf32> to vector<1x128xf32>
    %c1_74 = arith.constant 1 : index
    %c896_75 = arith.constant 896 : index
    %179 = vector.load %arg15[%c1_74, %c896_75] : memref<2x1024xf32, #tpu.memory_space<vmem>>, vector<1x128xf32>
    tpu.vector_store %arg15[%c1_74, %c896_75], %178 {strides = array<i32>} : memref<2x1024xf32, #tpu.memory_space<vmem>>, vector<1x128xf32>,
    %c0_76 = arith.constant 0 : index
    %c0_77 = arith.constant 0 : index
    %180 = vector.load %arg15[%c0_76, %c0_77] : memref<2x1024xf32, #tpu.memory_space<vmem>>, vector<2x1024xf32>
    %c0_78 = arith.constant 0 : index
    %c0_79 = arith.constant 0 : index
    %181 = vector.load %arg11[%c0_78, %c0_79] : memref<1024x128xf32, #tpu.memory_space<vmem>>, vector<1024x128xf32>
    %cst_80 = arith.constant dense<0.000000e+00> : vector<2x128xf32>
    %182 = tpu.matmul %180, %181, %cst_80 {dimension_numbers = #tpu.dot_dimension_numbers<[1], [0], [0], [1], [0, 0, 1, 1], [], []>} : vector<2x1024xf32>, vector<1024x128xf32>, vector<2x128xf32> -> vector<2x128xf32>
    %c0_81 = arith.constant 0 : index
    %c0_82 = arith.constant 0 : index
    %183 = vector.load %arg2[%c0_81, %c0_82] : memref<2x20xf32, #tpu.memory_space<vmem>>, vector<2x20xf32>
    %c0_83 = arith.constant 0 : index
    %c0_84 = arith.constant 0 : index
    %184 = vector.load %arg12[%c0_83, %c0_84] : memref<20x128xf32, #tpu.memory_space<vmem>>, vector<20x128xf32>
    %cst_85 = arith.constant dense<0.000000e+00> : vector<2x128xf32>
    %185 = tpu.matmul %183, %184, %cst_85 {dimension_numbers = #tpu.dot_dimension_numbers<[1], [0], [0], [1], [0, 0, 1, 1], [], []>} : vector<2x20xf32>, vector<20x128xf32>, vector<2x128xf32> -> vector<2x128xf32>
    %186 = arith.addf %182, %185 : vector<2x128xf32>
    %c0_86 = arith.constant 0 : index
    %c0_87 = arith.constant 0 : index
    %187 = vector.load %arg13[%c0_86, %c0_87] : memref<1x128xf32, #tpu.memory_space<vmem>>, vector<1x128xf32>
    %188 = vector.broadcast %187 : vector<1x128xf32> to vector<2x128xf32>
    %189 = arith.addf %186, %188 : vector<2x128xf32>
    %c0_88 = arith.constant 0 : index
    %c0_89 = arith.constant 0 : index
    %190 = vector.load %arg14[%c0_88, %c0_89] : memref<2x128xf32, #tpu.memory_space<vmem>>, vector<2x128xf32>
    tpu.vector_store %arg14[%c0_88, %c0_89], %189 {strides = array<i32>} : memref<2x128xf32, #tpu.memory_space<vmem>>, vector<2x128xf32>,
    return
  }
  func.func @transform_0(%arg0: i32) -> (i32, i32, i32) {
    %c0_i32 = arith.constant 0 : i32
    %c0_i32_0 = arith.constant 0 : i32
    %c0_i32_1 = arith.constant 0 : i32
    %c0_i32_2 = arith.constant 0 : i32
    return %c0_i32, %c0_i32_0, %c0_i32_1 : i32, i32, i32
  }
  func.func @transform_1(%arg0: i32) -> (i32, i32) {
    %c0_i32 = arith.constant 0 : i32
    %c0_i32_0 = arith.constant 0 : i32
    %c0_i32_1 = arith.constant 0 : i32
    return %c0_i32, %c0_i32_0 : i32, i32
  }
  func.func @transform_2(%arg0: i32) -> (i32, i32) {
    %c0_i32 = arith.constant 0 : i32
    %c0_i32_0 = arith.constant 0 : i32
    %c0_i32_1 = arith.constant 0 : i32
    return %c0_i32, %c0_i32_0 : i32, i32
  }
  func.func @transform_3(%arg0: i32) -> (i32, i32) {
    %c0_i32 = arith.constant 0 : i32
    %c0_i32_0 = arith.constant 0 : i32
    %c0_i32_1 = arith.constant 0 : i32
    return %c0_i32, %c0_i32_0 : i32, i32
  }
  func.func @transform_4(%arg0: i32) -> (i32, i32) {
    %c0_i32 = arith.constant 0 : i32
    %c0_i32_0 = arith.constant 0 : i32
    %c0_i32_1 = arith.constant 0 : i32
    return %c0_i32, %c0_i32_0 : i32, i32
  }
  func.func @transform_5(%arg0: i32) -> (i32, i32) {
    %c0_i32 = arith.constant 0 : i32
    %c0_i32_0 = arith.constant 0 : i32
    %c0_i32_1 = arith.constant 0 : i32
    return %c0_i32, %c0_i32_0 : i32, i32
  }
  func.func @transform_6(%arg0: i32) -> (i32, i32) {
    %c0_i32 = arith.constant 0 : i32
    %c0_i32_0 = arith.constant 0 : i32
    %c0_i32_1 = arith.constant 0 : i32
    return %c0_i32, %c0_i32_0 : i32, i32
  }
  func.func @transform_7(%arg0: i32) -> (i32, i32) {
    %c0_i32 = arith.constant 0 : i32
    %c0_i32_0 = arith.constant 0 : i32
    %c0_i32_1 = arith.constant 0 : i32
    return %c0_i32, %c0_i32_0 : i32, i32
  }
  func.func @transform_8(%arg0: i32) -> (i32, i32) {
    %c0_i32 = arith.constant 0 : i32
    %c0_i32_0 = arith.constant 0 : i32
    %c0_i32_1 = arith.constant 0 : i32
    return %c0_i32, %c0_i32_0 : i32, i32
  }
  func.func @transform_9(%arg0: i32) -> (i32, i32) {
    %c0_i32 = arith.constant 0 : i32
    %c0_i32_0 = arith.constant 0 : i32
    %c0_i32_1 = arith.constant 0 : i32
    return %c0_i32, %c0_i32_0 : i32, i32
  }
  func.func @transform_10(%arg0: i32) -> (i32, i32) {
    %c0_i32 = arith.constant 0 : i32
    %c0_i32_0 = arith.constant 0 : i32
    %c0_i32_1 = arith.constant 0 : i32
    return %c0_i32, %c0_i32_0 : i32, i32
  }
  func.func @transform_11(%arg0: i32) -> (i32, i32) {
    %c0_i32 = arith.constant 0 : i32
    %c0_i32_0 = arith.constant 0 : i32
    %c0_i32_1 = arith.constant 0 : i32
    return %c0_i32, %c0_i32_0 : i32, i32
  }
  func.func @transform_12(%arg0: i32) -> (i32, i32) {
    %c0_i32 = arith.constant 0 : i32
    %c0_i32_0 = arith.constant 0 : i32
    %c0_i32_1 = arith.constant 0 : i32
    return %c0_i32, %c0_i32_0 : i32, i32
  }
  func.func @transform_13(%arg0: i32) -> (i32, i32) {
    %c0_i32 = arith.constant 0 : i32
    %c0_i32_0 = arith.constant 0 : i32
    %c0_i32_1 = arith.constant 0 : i32
    return %c0_i32, %c0_i32_0 : i32, i32
  }
}

</mosaic_0001>

<llo_original>
// kernel: tpu_custom_call.1
$region0: #{tpu_custom_call.1}
  #allocation0 [shape = 'u32[]', space=smem, size = 0x4, offset = 0x4, fixed_abs, tag = 'smem constant byte address 0x4 - core index']
  #allocation1 [shape = 'u32[144,128]{1,0:T(1,128)}', space=vmem, size = 0x12000, scoped, tag = 'internal scratch']
  #allocation2 [shape = 'f32[2,1024]{1,0:T(2,128)}', space=vmem, size = 0x2000, scoped, tag = 'scratch operand']
  %s0 = inlined_call_operand.hbm [shape: f32[2,8,32], index: 0, kind: input, shape index: {}]
  %s1 = inlined_call_operand.hbm [shape: f32[2,20], index: 1, kind: input, shape index: {}]
  %s2 = inlined_call_operand.hbm [shape: f32[32,256], index: 2, kind: input, shape index: {}]
  %s3 = inlined_call_operand.hbm [shape: f32[1,256], index: 3, kind: input, shape index: {}]
  %s4 = inlined_call_operand.hbm [shape: f32[8,256], index: 4, kind: input, shape index: {}]
  %s5 = inlined_call_operand.vmem [shape: f32[8,256], index: 5, kind: input, shape index: {}]
  %s6 = inlined_call_operand.hbm [shape: f32[256,128], index: 6, kind: input, shape index: {}]
  %s7 = inlined_call_operand.vmem [shape: f32[1,128], index: 7, kind: input, shape index: {}]
  %s8 = inlined_call_operand.hbm [shape: f32[8,128], index: 8, kind: input, shape index: {}]
  %s9 = inlined_call_operand.hbm [shape: f32[8,128], index: 9, kind: input, shape index: {}]
  %s10 = inlined_call_operand.hbm [shape: f32[1024,128], index: 10, kind: input, shape index: {}]
  %s11 = inlined_call_operand.vmem [shape: f32[20,128], index: 11, kind: input, shape index: {}]
  %s12 = inlined_call_operand.vmem [shape: f32[1,128], index: 12, kind: input, shape index: {}]
  %s13 = inlined_call_operand.hbm [shape: f32[2,128], index: 13, kind: output, shape index: {}]
  %s14 = sld [smem:[#allocation0]]
  $region98: #{tpu_custom_call.1} parent=0
    _
  %s16 = ssub.s32 1, %s14
  %s17 = scalar_select 0, %s16, %s14
  $region1: #{tpu_custom_call.1} parent=0
    #allocation3 [shape = 'u8[8192]{0}', space=vmem, size = 0x2000, scoped, tag = 'input window, operand 0, single buffered']
    #allocation4 [shape = 's32[1]{0}', space=sflag, size = 0x4, scoped, tag = 'scoped memory for tpu_custom_call.1']
    #allocation5 [shape = 's32[1]{0}', space=sflag, size = 0x4, scoped, tag = 'scoped memory for tpu_custom_call.1']
    #allocation6 [shape = 'u8[1024]{0}', space=vmem, size = 0x400, scoped, tag = 'input window, operand 1, single buffered']
    #allocation7 [shape = 's32[1]{0}', space=sflag, size = 0x4, scoped, tag = 'scoped memory for tpu_custom_call.1']
    #allocation8 [shape = 'u8[32768]{0}', space=vmem, size = 0x8000, scoped, tag = 'input window, operand 2, single buffered']
    #allocation9 [shape = 'u8[1024]{0}', space=vmem, size = 0x400, scoped, tag = 'input window, operand 3, single buffered']
    #allocation10 [shape = 's32[1]{0}', space=sflag, size = 0x4, scoped, tag = 'scoped memory for tpu_custom_call.1']
    #allocation11 [shape = 'u8[8192]{0}', space=vmem, size = 0x2000, scoped, tag = 'input window, operand 4, single buffered']
    #allocation12 [shape = 'u8[131072]{0}', space=vmem, size = 0x20000, scoped, tag = 'input window, operand 6, single buffered']
    #allocation13 [shape = 's32[1]{0}', space=sflag, size = 0x4, scoped, tag = 'scoped memory for tpu_custom_call.1']
    #allocation14 [shape = 'u8[4096]{0}', space=vmem, size = 0x1000, scoped, tag = 'input window, operand 8, single buffered']
    #allocation15 [shape = 'u8[4096]{0}', space=vmem, size = 0x1000, scoped, tag = 'input window, operand 9, single buffered']
    #allocation16 [shape = 's32[1]{0}', space=sflag, size = 0x4, scoped, tag = 'scoped memory for tpu_custom_call.1']
    #allocation17 [shape = 'u8[524288]{0}', space=vmem, size = 0x80000, scoped, tag = 'input window, operand 10, single buffered']
    #allocation18 [shape = 'u8[1024]{0}', space=vmem, size = 0x400, scoped, tag = 'output window, operand 0, single buffered']
    %18 = vsyncpa [#allocation4], 0
    %19 = vsyncpa [#allocation7], 0
    %20 = vsyncpa [#allocation10], 0
    %21 = vsyncpa [#allocation13], 0
    %22 = vsyncpa [#allocation16], 0
    %23 = vsyncpa [#allocation5], 0
    // Predicated region
    $region2: #{tpu_custom_call.1} parent=1 // pred_check
      _
    $region3: #{tpu_custom_call.1} parent=1 // pred_check_branch
      %25 = sbr.rel (0) target = $region5
    $region4: #{tpu_custom_call.1} parent=1 // pred_region
      %s27 = ssub.s32 256, 256
      %28 = vsyncadd [#allocation4], %s27
      %s29 = sshll.u32 [#allocation3], 4
      %s30 = int_to_ptr.vmem [resolvable:$true] %s29
      %35 = dma.hbm_to_vmem [thread:$0]  %s0, 256, %s30, [#allocation4], 128, 128, 8
    $region5: #{tpu_custom_call.1} parent=1 // pred_fallthru
      _
    // Predicated region
    $region6: #{tpu_custom_call.1} parent=1 // pred_check
      _
    $region7: #{tpu_custom_call.1} parent=1 // pred_check_branch
      %37 = sbr.rel (0) target = $region9
    $region8: #{tpu_custom_call.1} parent=1 // pred_region
      %s39 = ssub.s32 32, 32
      %40 = vsyncadd [#allocation7], %s39
      %s42 = sshll.u32 [#allocation6], 4
      %s43 = int_to_ptr.vmem [resolvable:$true] %s42
      %45 = dma.hbm_to_vmem [thread:$0]  %s1, 32, %s43, [#allocation7]
    $region9: #{tpu_custom_call.1} parent=1 // pred_fallthru
      _
    // Predicated region
    $region10: #{tpu_custom_call.1} parent=1 // pred_check
      _
    $region11: #{tpu_custom_call.1} parent=1 // pred_check_branch
      %47 = sbr.rel (0) target = $region13
    $region12: #{tpu_custom_call.1} parent=1 // pred_region
      %s49 = ssub.s32 1024, 1024
      %50 = vsyncadd [#allocation7], %s49
      %s51 = sshll.u32 [#allocation8], 4
      %s52 = int_to_ptr.vmem [resolvable:$true] %s51
      %57 = dma.hbm_to_vmem [thread:$0]  %s2, 1024, %s52, [#allocation7], 256, 256, 16
    $region13: #{tpu_custom_call.1} parent=1 // pred_fallthru
      _
    // Predicated region
    $region14: #{tpu_custom_call.1} parent=1 // pred_check
      _
    $region15: #{tpu_custom_call.1} parent=1 // pred_check_branch
      %59 = sbr.rel (0) target = $region17
    $region16: #{tpu_custom_call.1} parent=1 // pred_region
      %s61 = ssub.s32 32, 32
      %62 = vsyncadd [#allocation10], %s61
      %s64 = sshll.u32 [#allocation9], 4
      %s65 = int_to_ptr.vmem [resolvable:$true] %s64
      %67 = dma.hbm_to_vmem [thread:$0]  %s3, 32, %s65, [#allocation10]
    $region17: #{tpu_custom_call.1} parent=1 // pred_fallthru
      _
    // Predicated region
    $region18: #{tpu_custom_call.1} parent=1 // pred_check
      _
    $region19: #{tpu_custom_call.1} parent=1 // pred_check_branch
      %69 = sbr.rel (0) target = $region21
    $region20: #{tpu_custom_call.1} parent=1 // pred_region
      %s71 = ssub.s32 256, 256
      %72 = vsyncadd [#allocation10], %s71
      %s74 = sshll.u32 [#allocation11], 4
      %s75 = int_to_ptr.vmem [resolvable:$true] %s74
      %77 = dma.hbm_to_vmem [thread:$0]  %s4, 256, %s75, [#allocation10]
    $region21: #{tpu_custom_call.1} parent=1 // pred_fallthru
      _
    // Predicated region
    $region22: #{tpu_custom_call.1} parent=1 // pred_check
      _
    $region23: #{tpu_custom_call.1} parent=1 // pred_check_branch
      %79 = sbr.rel (0) target = $region25
    $region24: #{tpu_custom_call.1} parent=1 // pred_region
      _
    $region25: #{tpu_custom_call.1} parent=1 // pred_fallthru
      _
    // Predicated region
    $region26: #{tpu_custom_call.1} parent=1 // pred_check
      _
    $region27: #{tpu_custom_call.1} parent=1 // pred_check_branch
      %81 = sbr.rel (0) target = $region29
    $region28: #{tpu_custom_call.1} parent=1 // pred_region
      %s83 = ssub.s32 4096, 4096
      %84 = vsyncadd [#allocation13], %s83
      %s85 = sshll.u32 [#allocation12], 4
      %s86 = int_to_ptr.vmem [resolvable:$true] %s85
      %91 = dma.hbm_to_vmem [thread:$0]  %s6, 4096, %s86, [#allocation13], 128, 128, 8
    $region29: #{tpu_custom_call.1} parent=1 // pred_fallthru
      _
    // Predicated region
    $region30: #{tpu_custom_call.1} parent=1 // pred_check
      _
    $region31: #{tpu_custom_call.1} parent=1 // pred_check_branch
      %93 = sbr.rel (0) target = $region33
    $region32: #{tpu_custom_call.1} parent=1 // pred_region
      _
    $region33: #{tpu_custom_call.1} parent=1 // pred_fallthru
      _
    // Predicated region
    $region34: #{tpu_custom_call.1} parent=1 // pred_check
      _
    $region35: #{tpu_custom_call.1} parent=1 // pred_check_branch
      %95 = sbr.rel (0) target = $region37
    $region36: #{tpu_custom_call.1} parent=1 // pred_region
      %s97 = ssub.s32 128, 128
      %98 = vsyncadd [#allocation13], %s97
      %s100 = sshll.u32 [#allocation14], 4
      %s101 = int_to_ptr.vmem [resolvable:$true] %s100
      %103 = dma.hbm_to_vmem [thread:$0]  %s8, 128, %s101, [#allocation13]
    $region37: #{tpu_custom_call.1} parent=1 // pred_fallthru
      _
    // Predicated region
    $region38: #{tpu_custom_call.1} parent=1 // pred_check
      _
    $region39: #{tpu_custom_call.1} parent=1 // pred_check_branch
      %105 = sbr.rel (0) target = $region41
    $region40: #{tpu_custom_call.1} parent=1 // pred_region
      %s107 = ssub.s32 128, 128
      %108 = vsyncadd [#allocation16], %s107
      %s110 = sshll.u32 [#allocation15], 4
      %s111 = int_to_ptr.vmem [resolvable:$true] %s110
      %113 = dma.hbm_to_vmem [thread:$0]  %s9, 128, %s111, [#allocation16]
    $region41: #{tpu_custom_call.1} parent=1 // pred_fallthru
      _
    // Predicated region
    $region42: #{tpu_custom_call.1} parent=1 // pred_check
      _
    $region43: #{tpu_custom_call.1} parent=1 // pred_check_branch
      %115 = sbr.rel (0) target = $region45
    $region44: #{tpu_custom_call.1} parent=1 // pred_region
      %s117 = ssub.s32 16384, 16384
      %118 = vsyncadd [#allocation16], %s117
      %s119 = sshll.u32 [#allocation17], 4
      %s120 = int_to_ptr.vmem [resolvable:$true] %s119
      %125 = dma.hbm_to_vmem [thread:$0]  %s10, 16384, %s120, [#allocation16], 128, 128, 8
    $region45: #{tpu_custom_call.1} parent=1 // pred_fallthru
      _
    // Predicated region
    $region46: #{tpu_custom_call.1} parent=1 // pred_check
      _
    $region47: #{tpu_custom_call.1} parent=1 // pred_check_branch
      %127 = sbr.rel (0) target = $region49
    $region48: #{tpu_custom_call.1} parent=1 // pred_region
      _
    $region49: #{tpu_custom_call.1} parent=1 // pred_fallthru
      _
    // Predicated region
    $region50: #{tpu_custom_call.1} parent=1 // pred_check
      _
    $region51: #{tpu_custom_call.1} parent=1 // pred_check_branch
      %129 = sbr.rel (0) target = $region53
    $region52: #{tpu_custom_call.1} parent=1 // pred_region
      _
    $region53: #{tpu_custom_call.1} parent=1 // pred_fallthru
      _
    // Predicated region
    $region54: #{tpu_custom_call.1} parent=1 // pred_check
      _
    $region55: #{tpu_custom_call.1} parent=1 // pred_check_branch
      %131 = sbr.rel (0) target = $region57
    $region56: #{tpu_custom_call.1} parent=1 // pred_region
      %132 = dma.done [#allocation4], 256
    $region57: #{tpu_custom_call.1} parent=1 // pred_fallthru
      _
    // Predicated region
    $region58: #{tpu_custom_call.1} parent=1 // pred_check
      _
    $region59: #{tpu_custom_call.1} parent=1 // pred_check_branch
      %134 = sbr.rel (0) target = $region61
    $region60: #{tpu_custom_call.1} parent=1 // pred_region
      %135 = dma.done [#allocation7], 32
    $region61: #{tpu_custom_call.1} parent=1 // pred_fallthru
      _
    // Predicated region
    $region62: #{tpu_custom_call.1} parent=1 // pred_check
      _
    $region63: #{tpu_custom_call.1} parent=1 // pred_check_branch
      %137 = sbr.rel (0) target = $region65
    $region64: #{tpu_custom_call.1} parent=1 // pred_region
      %138 = dma.done [#allocation7], 1024
    $region65: #{tpu_custom_call.1} parent=1 // pred_fallthru
      _
    // Predicated region
    $region66: #{tpu_custom_call.1} parent=1 // pred_check
      _
    $region67: #{tpu_custom_call.1} parent=1 // pred_check_branch
      %140 = sbr.rel (0) target = $region69
    $region68: #{tpu_custom_call.1} parent=1 // pred_region
      %141 = dma.done [#allocation10], 32
    $region69: #{tpu_custom_call.1} parent=1 // pred_fallthru
      _
    // Predicated region
    $region70: #{tpu_custom_call.1} parent=1 // pred_check
      _
    $region71: #{tpu_custom_call.1} parent=1 // pred_check_branch
      %143 = sbr.rel (0) target = $region73
    $region72: #{tpu_custom_call.1} parent=1 // pred_region
      %144 = dma.done [#allocation10], 256
    $region73: #{tpu_custom_call.1} parent=1 // pred_fallthru
      _
    // Predicated region
    $region74: #{tpu_custom_call.1} parent=1 // pred_check
      _
    $region75: #{tpu_custom_call.1} parent=1 // pred_check_branch
      %146 = sbr.rel (0) target = $region77
    $region76: #{tpu_custom_call.1} parent=1 // pred_region
      %147 = dma.done [#allocation13], 4096
    $region77: #{tpu_custom_call.1} parent=1 // pred_fallthru
      _
    // Predicated region
    $region78: #{tpu_custom_call.1} parent=1 // pred_check
      _
    $region79: #{tpu_custom_call.1} parent=1 // pred_check_branch
      %149 = sbr.rel (0) target = $region81
    $region80: #{tpu_custom_call.1} parent=1 // pred_region
      %150 = dma.done [#allocation13], 128
    $region81: #{tpu_custom_call.1} parent=1 // pred_fallthru
      _
    // Predicated region
    $region82: #{tpu_custom_call.1} parent=1 // pred_check
      _
    $region83: #{tpu_custom_call.1} parent=1 // pred_check_branch
      %152 = sbr.rel (0) target = $region85
    $region84: #{tpu_custom_call.1} parent=1 // pred_region
      %153 = dma.done [#allocation16], 128
    $region85: #{tpu_custom_call.1} parent=1 // pred_fallthru
      _
    // Predicated region
    $region86: #{tpu_custom_call.1} parent=1 // pred_check
      _
    $region87: #{tpu_custom_call.1} parent=1 // pred_check_branch
      %155 = sbr.rel (0) target = $region89
    $region88: #{tpu_custom_call.1} parent=1 // pred_region
      %156 = dma.done [#allocation16], 16384
    $region89: #{tpu_custom_call.1} parent=1 // pred_fallthru
      _
    %v157 = vld [vmem:[#allocation8] sm:$0xff]
    %v158 = vld [vmem:[#allocation8 + $0x8] sm:$0xff]
    %v159 = vld [vmem:[#allocation8 + $0x10] sm:$0xff]
    %v160 = vld [vmem:[#allocation8 + $0x18] sm:$0xff]
    %v161 = vld [vmem:[#allocation8 + $0x20] sm:$0xff]
    %v162 = vld [vmem:[#allocation8 + $0x28] sm:$0xff]
    %v163 = vld [vmem:[#allocation8 + $0x30] sm:$0xff]
    %v164 = vld [vmem:[#allocation8 + $0x38] sm:$0xff]
    %v165 = vld [vmem:[#allocation9] sm:$0x3]
    %v166 = vld [vmem:[#allocation11] sm:$0xff]
    %v167 = vld [vmem:[#allocation11 + $0x8] sm:$0xff]
    %v168 = vld [vmem:[%s5] sm:$0xff]
    %v169 = vld [vmem:[%s5 + $0x8] sm:$0xff]
    %v170 = vld [vmem:[#allocation12] sm:$0xff]
    %v171 = vld [vmem:[#allocation12 + $0x8] sm:$0xff]
    %v172 = vld [vmem:[#allocation12 + $0x10] sm:$0xff]
    %v173 = vld [vmem:[#allocation12 + $0x18] sm:$0xff]
    %v174 = vld [vmem:[#allocation12 + $0x20] sm:$0xff]
    %v175 = vld [vmem:[#allocation12 + $0x28] sm:$0xff]
    %v176 = vld [vmem:[#allocation12 + $0x30] sm:$0xff]
    %v177 = vld [vmem:[#allocation12 + $0x38] sm:$0xff]
    %v178 = vld [vmem:[#allocation12 + $0x40] sm:$0xff]
    %v179 = vld [vmem:[#allocation12 + $0x48] sm:$0xff]
    %v180 = vld [vmem:[#allocation12 + $0x50] sm:$0xff]
    %v181 = vld [vmem:[#allocation12 + $0x58] sm:$0xff]
    %v182 = vld [vmem:[#allocation12 + $0x60] sm:$0xff]
    %v183 = vld [vmem:[#allocation12 + $0x68] sm:$0xff]
    %v184 = vld [vmem:[#allocation12 + $0x70] sm:$0xff]
    %v185 = vld [vmem:[#allocation12 + $0x78] sm:$0xff]
    %v186 = vld [vmem:[#allocation12 + $0x80] sm:$0xff]
    %v187 = vld [vmem:[#allocation12 + $0x88] sm:$0xff]
    %v188 = vld [vmem:[#allocation12 + $0x90] sm:$0xff]
    %v189 = vld [vmem:[#allocation12 + $0x98] sm:$0xff]
    %v190 = vld [vmem:[#allocation12 + $0xa0] sm:$0xff]
    %v191 = vld [vmem:[#allocation12 + $0xa8] sm:$0xff]
    %v192 = vld [vmem:[#allocation12 + $0xb0] sm:$0xff]
    %v193 = vld [vmem:[#allocation12 + $0xb8] sm:$0xff]
    %v194 = vld [vmem:[#allocation12 + $0xc0] sm:$0xff]
    %v195 = vld [vmem:[#allocation12 + $0xc8] sm:$0xff]
    %v196 = vld [vmem:[#allocation12 + $0xd0] sm:$0xff]
    %v197 = vld [vmem:[#allocation12 + $0xd8] sm:$0xff]
    %v198 = vld [vmem:[#allocation12 + $0xe0] sm:$0xff]
    %v199 = vld [vmem:[#allocation12 + $0xe8] sm:$0xff]
    %v200 = vld [vmem:[#allocation12 + $0xf0] sm:$0xff]
    %v201 = vld [vmem:[#allocation12 + $0xf8] sm:$0xff]
    %v202 = vld [vmem:[%s7] sm:$0x1]
    %v203 = vld [vmem:[#allocation14] sm:$0xff]
    %v204 = vld [vmem:[#allocation15] sm:$0xff]
    %v205 = vld [vmem:[#allocation3] sm:$0xff]
    %v207 = vlaneseq
    %v208 = vshrl.u32 %v207, 7
    %v209 = vsub.s32 0, %v208
    %v210 = vrot.slane %v165, %v209
    %v211 = vlaneseq
    %v212 = vshrl.u32 %v211, 7
    %v213 = vsub.s32 1, %v212
    %v214 = vrot.slane %v165, %v213
    %vm217 = vcmask 261120
    %v219 = vsel %vm217, %v205, 0
    %221 = vmatprep.subr.mxu0 %v158
    %222 = vmatpush1.msra.mxu0 %v157
    %223 = vmatprep.subr.mxu0 %v160
    %224 = vmatpush1.msra.mxu0 %v159
    %225 = vmatprep.subr.mxu0 %v162
    %226 = vmatpush1.msra.mxu0 %v161
    %227 = vmatprep.subr.mxu0 %v164
    %228 = vmatpush1.msra.mxu0 %v163
    %229 = vmatprep.subr.mxu0 0.0
    %230 = vmatpush1.msra.mxu0 0.0
    %231 = vmatprep.subr.mxu0 0.0
    %232 = vmatpush1.msra.mxu0 0.0
    %233 = vmatprep.subr.mxu0 0.0
    %234 = vmatpush1.msra.mxu0 0.0
    %235 = vmatprep.subr.mxu0 0.0
    %236 = vmatpush1.msra.mxu0 0.0
    %237 = vmatprep.subr.mxu0 0.0
    %238 = vmatpush1.msra.mxu0 0.0
    %239 = vmatprep.subr.mxu0 0.0
    %240 = vmatpush1.msra.mxu0 0.0
    %241 = vmatprep.subr.mxu0 0.0
    %242 = vmatpush1.msra.mxu0 0.0
    %243 = vmatprep.subr.mxu0 0.0
    %244 = vmatpush1.msra.mxu0 0.0
    %245 = vmatprep.subr.mxu0 0.0
    %246 = vmatpush1.msra.mxu0 0.0
    %247 = vmatprep.subr.mxu0 0.0
    %248 = vmatpush1.msra.mxu0 0.0
    %249 = vmatprep.subr.mxu0 0.0
    %250 = vmatpush1.msra.mxu0 0.0
    %251 = vmatprep.subr.mxu0 0.0
    %252 = vmatpush1.msra.mxu0 0.0
    %253 = vmatprep.subr.mxu0 0.0
    %254 = vmatpush1.msra.mxu0 0.0
    %255 = vmatprep.subr.mxu0 0.0
    %256 = vmatpush1.msra.mxu0 0.0
    %257 = vmatprep.subr.mxu0 0.0
    %258 = vmatpush1.msra.mxu0 0.0
    %259 = vmatprep.subr.mxu0 0.0
    %260 = vmatpush1.msra.mxu0 0.0
    %261 = vmatprep.subr.mxu0 0.0
    %262 = vmatpush1.msra.mxu0 0.0
    %263 = vmatprep.subr.mxu0 0.0
    %264 = vmatpush1.msra.mxu0 0.0
    %265 = vmatprep.subr.mxu0 0.0
    %266 = vmatpush1.msra.mxu0 0.0
    %267 = vmatprep.subr.mxu0 0.0
    %268 = vmatpush1.msra.mxu0 0.0
    %269 = vmatprep.subr.mxu0 0.0
    %270 = vmatpush1.msra.mxu0 0.0
    %271 = vmatprep.subr.mxu0 0.0
    %272 = vmatpush1.msra.mxu0 0.0
    %273 = vmatprep.subr.mxu0 0.0
    %274 = vmatpush1.msra.mxu0 0.0
    %275 = vmatprep.subr.mxu0 0.0
    %276 = vmatpush1.msra.mxu0 0.0
    %277 = vmatprep.subr.mxu0 0.0
    %278 = vmatpush1.msra.mxu0 0.0
    %279 = vmatprep.subr.mxu0 0.0
    %280 = vmatpush1.msra.mxu0 0.0
    %281 = vmatprep.subr.mxu0 0.0
    %282 = vmatpush1.msra.mxu0 0.0
    %283 = vmatprep.subr.mxu0 0.0
    %284 = vmatpush1.msra.mxu0 0.0
    %285 = vmatprep.mubr.f32.mxu0 0.0
    %286 = vmatmul.mubr.f32.gmra.mrb[0].mxu0 %v219
    %v287 = vpop.f32.mrb[0].mxu0
    %v288 = vadd.f32 %v210, %v287
    %v289 = vpop.f32.mrb[0].mxu0
    %v290 = vadd.f32 %v214, %v289
    %291 = vdwg.mxu0
    %v292 = vadd.f32 %v288, %v290
    %293 = vadd.xlane.f32.xlu0 %v292
    %v294 = vpop.xlane.xlu0 %293
    %v295 = vrot.slane %v294, 4
    %v296 = vadd.f32 %v294, %v295
    %v297 = vrot.slane %v296, 2
    %v298 = vadd.f32 %v296, %v297
    %v299 = vrot.slane %v298, 1
    %v300 = vadd.f32 %v298, %v299
    %s301 = vtos %v300
    %v302 = vstv %s301
    %v303 = vrcp.pop 2048.0
    %v304 = vmul.f32 %v302, %v303
    %v305 = vsub.f32 %v288, %v304
    %v306 = vsub.f32 %v290, %v304
    %v307 = vmul.f32 %v305, %v305
    %v308 = vmul.f32 %v306, %v306
    %v309 = vadd.f32 %v307, %v308
    %310 = vadd.xlane.f32.xlu0 %v309
    %v311 = vpop.xlane.xlu0 %310
    %v312 = vrot.slane %v311, 4
    %v313 = vadd.f32 %v311, %v312
    %v314 = vrot.slane %v313, 2
    %v315 = vadd.f32 %v313, %v314
    %v316 = vrot.slane %v315, 1
    %v317 = vadd.f32 %v315, %v316
    %s318 = vtos %v317
    %v319 = vstv %s318
    %v320 = vmul.f32 %v319, %v303
    %v321 = vadd.f32 %v320, 1e-05
    %v322 = vrsqrt.pop %v321
    %v323 = vmul.f32 %v305, %v322
    %v324 = vmul.f32 %v306, %v322
    %v325 = vmul.f32 %v323, %v166
    %v326 = vmul.f32 %v324, %v167
    %v327 = vadd.f32 %v325, %v168
    %v328 = vadd.f32 %v326, %v169
    %vm329 = vcmp.ge.f32.partialorder %v327, 0.0
    %vm330 = vcmp.ge.f32.partialorder %v328, 0.0
    %v331 = vmul.f32 %v327, 0.01
    %v332 = vmul.f32 %v328, 0.01
    %v333 = vsel %vm329, %v327, %v331
    %v334 = vsel %vm330, %v328, %v332
    %v336 = vlaneseq
    %v337 = vshrl.u32 %v336, 7
    %v338 = vsub.s32 0, %v337
    %v339 = vrot.slane %v202, %v338
    %341 = vmatprep.subr.mxu0 0.0
    %342 = vmatpush1.msra.mxu0 %v170
    %343 = vmatprep.subr.mxu0 0.0
    %344 = vmatpush1.msra.mxu0 %v171
    %345 = vmatprep.subr.mxu0 0.0
    %346 = vmatpush1.msra.mxu0 %v172
    %347 = vmatprep.subr.mxu0 0.0
    %348 = vmatpush1.msra.mxu0 %v173
    %349 = vmatprep.subr.mxu0 0.0
    %350 = vmatpush1.msra.mxu0 %v174
    %351 = vmatprep.subr.mxu0 0.0
    %352 = vmatpush1.msra.mxu0 %v175
    %353 = vmatprep.subr.mxu0 0.0
    %354 = vmatpush1.msra.mxu0 %v176
    %355 = vmatprep.subr.mxu0 0.0
    %356 = vmatpush1.msra.mxu0 %v177
    %357 = vmatprep.subr.mxu0 0.0
    %358 = vmatpush1.msra.mxu0 %v178
    %359 = vmatprep.subr.mxu0 0.0
    %360 = vmatpush1.msra.mxu0 %v179
    %361 = vmatprep.subr.mxu0 0.0
    %362 = vmatpush1.msra.mxu0 %v180
    %363 = vmatprep.subr.mxu0 0.0
    %364 = vmatpush1.msra.mxu0 %v181
    %365 = vmatprep.subr.mxu0 0.0
    %366 = vmatpush1.msra.mxu0 %v182
    %367 = vmatprep.subr.mxu0 0.0
    %368 = vmatpush1.msra.mxu0 %v183
    %369 = vmatprep.subr.mxu0 0.0
    %370 = vmatpush1.msra.mxu0 %v184
    %371 = vmatprep.subr.mxu0 0.0
    %372 = vmatpush1.msra.mxu0 %v185
    %373 = vmatprep.subr.mxu0 0.0
    %374 = vmatpush1.msra.mxu0 %v186
    %375 = vmatprep.subr.mxu0 0.0
    %376 = vmatpush1.msra.mxu0 %v187
    %377 = vmatprep.subr.mxu0 0.0
    %378 = vmatpush1.msra.mxu0 %v188
    %379 = vmatprep.subr.mxu0 0.0
    %380 = vmatpush1.msra.mxu0 %v189
    %381 = vmatprep.subr.mxu0 0.0
    %382 = vmatpush1.msra.mxu0 %v190
    %383 = vmatprep.subr.mxu0 0.0
    %384 = vmatpush1.msra.mxu0 %v191
    %385 = vmatprep.subr.mxu0 0.0
    %386 = vmatpush1.msra.mxu0 %v192
    %387 = vmatprep.subr.mxu0 0.0
    %388 = vmatpush1.msra.mxu0 %v193
    %389 = vmatprep.subr.mxu0 0.0
    %390 = vmatpush1.msra.mxu0 %v194
    %391 = vmatprep.subr.mxu0 0.0
    %392 = vmatpush1.msra.mxu0 %v195
    %393 = vmatprep.subr.mxu0 0.0
    %394 = vmatpush1.msra.mxu0 %v196
    %395 = vmatprep.subr.mxu0 0.0
    %396 = vmatpush1.msra.mxu0 %v197
    %397 = vmatprep.subr.mxu0 0.0
    %398 = vmatpush1.msra.mxu0 %v198
    %399 = vmatprep.subr.mxu0 0.0
    %400 = vmatpush1.msra.mxu0 %v199
    %401 = vmatprep.subr.mxu0 0.0
    %402 = vmatpush1.msra.mxu0 %v200
    %403 = vmatprep.subr.mxu0 0.0
    %404 = vmatpush1.msra.mxu0 %v201
    %405 = vmatprep.mubr.f32.mxu0 %v334
    %406 = vmatmul.mubr.f32.gmra.mrb[0].mxu0 %v333
    %v407 = vpop.f32.mrb[0].mxu0
    %v408 = vadd.f32 %v339, %v407
    %v409 = vpop.f32.mrb[0].mxu0
    %410 = vdwg.mxu0
    %411 = vadd.xlane.f32.xlu0 %v408
    %v412 = vpop.xlane.xlu0 %411
    %v413 = vrot.slane %v412, 4
    %v414 = vadd.f32 %v412, %v413
    %v415 = vrot.slane %v414, 2
    %v416 = vadd.f32 %v414, %v415
    %v417 = vrot.slane %v416, 1
    %v418 = vadd.f32 %v416, %v417
    %s419 = vtos %v418
    %v420 = vstv %s419
    %v421 = vrcp.pop 1024.0
    %v422 = vmul.f32 %v420, %v421
    %v423 = vsub.f32 %v408, %v422
    %v424 = vmul.f32 %v423, %v423
    %425 = vadd.xlane.f32.xlu0 %v424
    %v426 = vpop.xlane.xlu0 %425
    %v427 = vrot.slane %v426, 4
    %v428 = vadd.f32 %v426, %v427
    %v429 = vrot.slane %v428, 2
    %v430 = vadd.f32 %v428, %v429
    %v431 = vrot.slane %v430, 1
    %v432 = vadd.f32 %v430, %v431
    %s433 = vtos %v432
    %v434 = vstv %s433
    %v435 = vmul.f32 %v434, %v421
    %v436 = vadd.f32 %v435, 1e-05
    %v437 = vrsqrt.pop %v436
    %v438 = vmul.f32 %v423, %v437
    %v439 = vmul.f32 %v438, %v203
    %v440 = vadd.f32 %v439, %v204
    %vm441 = vcmp.ge.f32.partialorder %v440, 0.0
    %v442 = vmul.f32 %v440, 0.01
    %v443 = vsel %vm441, %v440, %v442
    %444 = vst [vmem:[#allocation2] sm:$0x1] %v443
    %v447 = vunpack.c.l.s4 1983009808
    %v448 = vunpack.c.0.s8 %v447
    %v449 = vlaneseq
    %v450 = vshrl.u32 %v449, 7
    %v451 = vsub.s32 %v448, %v450
    %v452 = vrot.slane %v443, %v451
    %v453 = vrot.slane %v452, 7
    %v454 = vrot.slane %v453, 2
    %456 = vst [vmem:[#allocation2 + $0x2] sm:$0x1] %v454
    %v457 = vcombine.high %v452, %v452
    %459 = vst [vmem:[#allocation2 + $0x4] sm:$0x1] %v457
    %v460 = vrot.slane %v457, 7
    %v461 = vrot.slane %v460, 2
    %463 = vst [vmem:[#allocation2 + $0x6] sm:$0x1] %v461
    %v464 = vcombine.high %v443, %v443
    %v466 = vunpack.c.l.s4 1983009808
    %v467 = vunpack.c.0.s8 %v466
    %v468 = vlaneseq
    %v469 = vshrl.u32 %v468, 7
    %v470 = vsub.s32 %v467, %v469
    %v471 = vrot.slane %v464, %v470
    %473 = vst [vmem:[#allocation2 + $0x8] sm:$0x1] %v471
    %v474 = vrot.slane %v471, 7
    %v475 = vrot.slane %v474, 2
    %477 = vst [vmem:[#allocation2 + $0xa] sm:$0x1] %v475
    %v478 = vcombine.high %v471, %v471
    %480 = vst [vmem:[#allocation2 + $0xc] sm:$0x1] %v478
    %v481 = vrot.slane %v478, 7
    %v482 = vrot.slane %v481, 2
    %484 = vst [vmem:[#allocation2 + $0xe] sm:$0x1] %v482
    %s485 = scalar_lea.vmem [#allocation3], 8
    %v486 = vld [vmem:[%s485] sm:$0xff]
    %v488 = vsel %vm217, %v486, 0
    %490 = vmatprep.subr.mxu0 %v158
    %491 = vmatpush1.msra.mxu0 %v157
    %492 = vmatprep.subr.mxu0 %v160
    %493 = vmatpush1.msra.mxu0 %v159
    %494 = vmatprep.subr.mxu0 %v162
    %495 = vmatpush1.msra.mxu0 %v161
    %496 = vmatprep.subr.mxu0 %v164
    %497 = vmatpush1.msra.mxu0 %v163
    %498 = vmatprep.subr.mxu0 0.0
    %499 = vmatpush1.msra.mxu0 0.0
    %500 = vmatprep.subr.mxu0 0.0
    %501 = vmatpush1.msra.mxu0 0.0
    %502 = vmatprep.subr.mxu0 0.0
    %503 = vmatpush1.msra.mxu0 0.0
    %504 = vmatprep.subr.mxu0 0.0
    %505 = vmatpush1.msra.mxu0 0.0
    %506 = vmatprep.subr.mxu0 0.0
    %507 = vmatpush1.msra.mxu0 0.0
    %508 = vmatprep.subr.mxu0 0.0
    %509 = vmatpush1.msra.mxu0 0.0
    %510 = vmatprep.subr.mxu0 0.0
    %511 = vmatpush1.msra.mxu0 0.0
    %512 = vmatprep.subr.mxu0 0.0
    %513 = vmatpush1.msra.mxu0 0.0
    %514 = vmatprep.subr.mxu0 0.0
    %515 = vmatpush1.msra.mxu0 0.0
    %516 = vmatprep.subr.mxu0 0.0
    %517 = vmatpush1.msra.mxu0 0.0
    %518 = vmatprep.subr.mxu0 0.0
    %519 = vmatpush1.msra.mxu0 0.0
    %520 = vmatprep.subr.mxu0 0.0
    %521 = vmatpush1.msra.mxu0 0.0
    %522 = vmatprep.subr.mxu0 0.0
    %523 = vmatpush1.msra.mxu0 0.0
    %524 = vmatprep.subr.mxu0 0.0
    %525 = vmatpush1.msra.mxu0 0.0
    %526 = vmatprep.subr.mxu0 0.0
    %527 = vmatpush1.msra.mxu0 0.0
    %528 = vmatprep.subr.mxu0 0.0
    %529 = vmatpush1.msra.mxu0 0.0
    %530 = vmatprep.subr.mxu0 0.0
    %531 = vmatpush1.msra.mxu0 0.0
    %532 = vmatprep.subr.mxu0 0.0
    %533 = vmatpush1.msra.mxu0 0.0
    %534 = vmatprep.subr.mxu0 0.0
    %535 = vmatpush1.msra.mxu0 0.0
    %536 = vmatprep.subr.mxu0 0.0
    %537 = vmatpush1.msra.mxu0 0.0
    %538 = vmatprep.subr.mxu0 0.0
    %539 = vmatpush1.msra.mxu0 0.0
    %540 = vmatprep.subr.mxu0 0.0
    %541 = vmatpush1.msra.mxu0 0.0
    %542 = vmatprep.subr.mxu0 0.0
    %543 = vmatpush1.msra.mxu0 0.0
    %544 = vmatprep.subr.mxu0 0.0
    %545 = vmatpush1.msra.mxu0 0.0
    %546 = vmatprep.subr.mxu0 0.0
    %547 = vmatpush1.msra.mxu0 0.0
    %548 = vmatprep.subr.mxu0 0.0
    %549 = vmatpush1.msra.mxu0 0.0
    %550 = vmatprep.subr.mxu0 0.0
    %551 = vmatpush1.msra.mxu0 0.0
    %552 = vmatprep.subr.mxu0 0.0
    %553 = vmatpush1.msra.mxu0 0.0
    %554 = vmatprep.mubr.f32.mxu0 0.0
    %555 = vmatmul.mubr.f32.gmra.mrb[0].mxu0 %v488
    %v556 = vpop.f32.mrb[0].mxu0
    %v557 = vadd.f32 %v210, %v556
    %v558 = vpop.f32.mrb[0].mxu0
    %v559 = vadd.f32 %v214, %v558
    %560 = vdwg.mxu0
    %v561 = vadd.f32 %v557, %v559
    %562 = vadd.xlane.f32.xlu0 %v561
    %v563 = vpop.xlane.xlu0 %562
    %v564 = vrot.slane %v563, 4
    %v565 = vadd.f32 %v563, %v564
    %v566 = vrot.slane %v565, 2
    %v567 = vadd.f32 %v565, %v566
    %v568 = vrot.slane %v567, 1
    %v569 = vadd.f32 %v567, %v568
    %s570 = vtos %v569
    %v571 = vstv %s570
    %v572 = vmul.f32 %v571, %v303
    %v573 = vsub.f32 %v557, %v572
    %v574 = vsub.f32 %v559, %v572
    %v575 = vmul.f32 %v573, %v573
    %v576 = vmul.f32 %v574, %v574
    %v577 = vadd.f32 %v575, %v576
    %578 = vadd.xlane.f32.xlu0 %v577
    %v579 = vpop.xlane.xlu0 %578
    %v580 = vrot.slane %v579, 4
    %v581 = vadd.f32 %v579, %v580
    %v582 = vrot.slane %v581, 2
    %v583 = vadd.f32 %v581, %v582
    %v584 = vrot.slane %v583, 1
    %v585 = vadd.f32 %v583, %v584
    %s586 = vtos %v585
    %v587 = vstv %s586
    %v588 = vmul.f32 %v587, %v303
    %v589 = vadd.f32 %v588, 1e-05
    %v590 = vrsqrt.pop %v589
    %v591 = vmul.f32 %v573, %v590
    %v592 = vmul.f32 %v574, %v590
    %v593 = vmul.f32 %v591, %v166
    %v594 = vmul.f32 %v592, %v167
    %v595 = vadd.f32 %v593, %v168
    %v596 = vadd.f32 %v594, %v169
    %vm597 = vcmp.ge.f32.partialorder %v595, 0.0
    %vm598 = vcmp.ge.f32.partialorder %v596, 0.0
    %v599 = vmul.f32 %v595, 0.01
    %v600 = vmul.f32 %v596, 0.01
    %v601 = vsel %vm597, %v595, %v599
    %v602 = vsel %vm598, %v596, %v600
    %603 = vmatprep.subr.mxu0 0.0
    %604 = vmatpush1.msra.mxu0 %v170
    %605 = vmatprep.subr.mxu0 0.0
    %606 = vmatpush1.msra.mxu0 %v171
    %607 = vmatprep.subr.mxu0 0.0
    %608 = vmatpush1.msra.mxu0 %v172
    %609 = vmatprep.subr.mxu0 0.0
    %610 = vmatpush1.msra.mxu0 %v173
    %611 = vmatprep.subr.mxu0 0.0
    %612 = vmatpush1.msra.mxu0 %v174
    %613 = vmatprep.subr.mxu0 0.0
    %614 = vmatpush1.msra.mxu0 %v175
    %615 = vmatprep.subr.mxu0 0.0
    %616 = vmatpush1.msra.mxu0 %v176
    %617 = vmatprep.subr.mxu0 0.0
    %618 = vmatpush1.msra.mxu0 %v177
    %619 = vmatprep.subr.mxu0 0.0
    %620 = vmatpush1.msra.mxu0 %v178
    %621 = vmatprep.subr.mxu0 0.0
    %622 = vmatpush1.msra.mxu0 %v179
    %623 = vmatprep.subr.mxu0 0.0
    %624 = vmatpush1.msra.mxu0 %v180
    %625 = vmatprep.subr.mxu0 0.0
    %626 = vmatpush1.msra.mxu0 %v181
    %627 = vmatprep.subr.mxu0 0.0
    %628 = vmatpush1.msra.mxu0 %v182
    %629 = vmatprep.subr.mxu0 0.0
    %630 = vmatpush1.msra.mxu0 %v183
    %631 = vmatprep.subr.mxu0 0.0
    %632 = vmatpush1.msra.mxu0 %v184
    %633 = vmatprep.subr.mxu0 0.0
    %634 = vmatpush1.msra.mxu0 %v185
    %635 = vmatprep.subr.mxu0 0.0
    %636 = vmatpush1.msra.mxu0 %v186
    %637 = vmatprep.subr.mxu0 0.0
    %638 = vmatpush1.msra.mxu0 %v187
    %639 = vmatprep.subr.mxu0 0.0
    %640 = vmatpush1.msra.mxu0 %v188
    %641 = vmatprep.subr.mxu0 0.0
    %642 = vmatpush1.msra.mxu0 %v189
    %643 = vmatprep.subr.mxu0 0.0
    %644 = vmatpush1.msra.mxu0 %v190
    %645 = vmatprep.subr.mxu0 0.0
    %646 = vmatpush1.msra.mxu0 %v191
    %647 = vmatprep.subr.mxu0 0.0
    %648 = vmatpush1.msra.mxu0 %v192
    %649 = vmatprep.subr.mxu0 0.0
    %650 = vmatpush1.msra.mxu0 %v193
    %651 = vmatprep.subr.mxu0 0.0
    %652 = vmatpush1.msra.mxu0 %v194
    %653 = vmatprep.subr.mxu0 0.0
    %654 = vmatpush1.msra.mxu0 %v195
    %655 = vmatprep.subr.mxu0 0.0
    %656 = vmatpush1.msra.mxu0 %v196
    %657 = vmatprep.subr.mxu0 0.0
    %658 = vmatpush1.msra.mxu0 %v197
    %659 = vmatprep.subr.mxu0 0.0
    %660 = vmatpush1.msra.mxu0 %v198
    %661 = vmatprep.subr.mxu0 0.0
    %662 = vmatpush1.msra.mxu0 %v199
    %663 = vmatprep.subr.mxu0 0.0
    %664 = vmatpush1.msra.mxu0 %v200
    %665 = vmatprep.subr.mxu0 0.0
    %666 = vmatpush1.msra.mxu0 %v201
    %667 = vmatprep.mubr.f32.mxu0 %v602
    %668 = vmatmul.mubr.f32.gmra.mrb[0].mxu0 %v601
    %v669 = vpop.f32.mrb[0].mxu0
    %v670 = vadd.f32 %v339, %v669
    %v671 = vpop.f32.mrb[0].mxu0
    %672 = vdwg.mxu0
    %673 = vadd.xlane.f32.xlu0 %v670
    %v674 = vpop.xlane.xlu0 %673
    %v675 = vrot.slane %v674, 4
    %v676 = vadd.f32 %v674, %v675
    %v677 = vrot.slane %v676, 2
    %v678 = vadd.f32 %v676, %v677
    %v679 = vrot.slane %v678, 1
    %v680 = vadd.f32 %v678, %v679
    %s681 = vtos %v680
    %v682 = vstv %s681
    %v683 = vmul.f32 %v682, %v421
    %v684 = vsub.f32 %v670, %v683
    %v685 = vmul.f32 %v684, %v684
    %686 = vadd.xlane.f32.xlu0 %v685
    %v687 = vpop.xlane.xlu0 %686
    %v688 = vrot.slane %v687, 4
    %v689 = vadd.f32 %v687, %v688
    %v690 = vrot.slane %v689, 2
    %v691 = vadd.f32 %v689, %v690
    %v692 = vrot.slane %v691, 1
    %v693 = vadd.f32 %v691, %v692
    %s694 = vtos %v693
    %v695 = vstv %s694
    %v696 = vmul.f32 %v695, %v421
    %v697 = vadd.f32 %v696, 1e-05
    %v698 = vrsqrt.pop %v697
    %v699 = vmul.f32 %v684, %v698
    %v700 = vmul.f32 %v699, %v203
    %v701 = vadd.f32 %v700, %v204
    %vm702 = vcmp.ge.f32.partialorder %v701, 0.0
    %v703 = vmul.f32 %v701, 0.01
    %v704 = vsel %vm702, %v701, %v703
    %705 = vst [vmem:[#allocation2 + $0x1] sm:$0x1] %v704
    %v708 = vunpack.c.l.s4 1983009808
    %v709 = vunpack.c.0.s8 %v708
    %v710 = vlaneseq
    %v711 = vshrl.u32 %v710, 7
    %v712 = vsub.s32 %v709, %v711
    %v713 = vrot.slane %v704, %v712
    %v714 = vrot.slane %v713, 7
    %v715 = vrot.slane %v714, 2
    %717 = vst [vmem:[#allocation2 + $0x3] sm:$0x1] %v715
    %v718 = vcombine.high %v713, %v713
    %720 = vst [vmem:[#allocation2 + $0x5] sm:$0x1] %v718
    %v721 = vrot.slane %v718, 7
    %v722 = vrot.slane %v721, 2
    %724 = vst [vmem:[#allocation2 + $0x7] sm:$0x1] %v722
    %v725 = vcombine.high %v704, %v704
    %v727 = vunpack.c.l.s4 1983009808
    %v728 = vunpack.c.0.s8 %v727
    %v729 = vlaneseq
    %v730 = vshrl.u32 %v729, 7
    %v731 = vsub.s32 %v728, %v730
    %v732 = vrot.slane %v725, %v731
    %734 = vst [vmem:[#allocation2 + $0x9] sm:$0x1] %v732
    %v735 = vrot.slane %v732, 7
    %v736 = vrot.slane %v735, 2
    %738 = vst [vmem:[#allocation2 + $0xb] sm:$0x1] %v736
    %v739 = vcombine.high %v732, %v732
    %741 = vst [vmem:[#allocation2 + $0xd] sm:$0x1] %v739
    %v742 = vrot.slane %v739, 7
    %v743 = vrot.slane %v742, 2
    %745 = vst [vmem:[#allocation2 + $0xf] sm:$0x1] %v743
    %v746 = vld [vmem:[#allocation2] sm:$0xff]
    %v747 = vld [vmem:[#allocation2 + $0x8] sm:$0xff]
    %v748 = vld [vmem:[#allocation17] sm:$0xff]
    %v749 = vld [vmem:[#allocation17 + $0x8] sm:$0xff]
    %v750 = vld [vmem:[#allocation17 + $0x10] sm:$0xff]
    %v751 = vld [vmem:[#allocation17 + $0x18] sm:$0xff]
    %v752 = vld [vmem:[#allocation17 + $0x20] sm:$0xff]
    %v753 = vld [vmem:[#allocation17 + $0x28] sm:$0xff]
    %v754 = vld [vmem:[#allocation17 + $0x30] sm:$0xff]
    %v755 = vld [vmem:[#allocation17 + $0x38] sm:$0xff]
    %v756 = vld [vmem:[#allocation17 + $0x40] sm:$0xff]
    %v757 = vld [vmem:[#allocation17 + $0x48] sm:$0xff]
    %v758 = vld [vmem:[#allocation17 + $0x50] sm:$0xff]
    %v759 = vld [vmem:[#allocation17 + $0x58] sm:$0xff]
    %v760 = vld [vmem:[#allocation17 + $0x60] sm:$0xff]
    %v761 = vld [vmem:[#allocation17 + $0x68] sm:$0xff]
    %v762 = vld [vmem:[#allocation17 + $0x70] sm:$0xff]
    %v763 = vld [vmem:[#allocation17 + $0x78] sm:$0xff]
    %v764 = vld [vmem:[#allocation17 + $0x80] sm:$0xff]
    %v765 = vld [vmem:[#allocation17 + $0x88] sm:$0xff]
    %v766 = vld [vmem:[#allocation17 + $0x90] sm:$0xff]
    %v767 = vld [vmem:[#allocation17 + $0x98] sm:$0xff]
    %v768 = vld [vmem:[#allocation17 + $0xa0] sm:$0xff]
    %v769 = vld [vmem:[#allocation17 + $0xa8] sm:$0xff]
    %v770 = vld [vmem:[#allocation17 + $0xb0] sm:$0xff]
    %v771 = vld [vmem:[#allocation17 + $0xb8] sm:$0xff]
    %v772 = vld [vmem:[#allocation17 + $0xc0] sm:$0xff]
    %v773 = vld [vmem:[#allocation17 + $0xc8] sm:$0xff]
    %v774 = vld [vmem:[#allocation17 + $0xd0] sm:$0xff]
    %v775 = vld [vmem:[#allocation17 + $0xd8] sm:$0xff]
    %v776 = vld [vmem:[#allocation17 + $0xe0] sm:$0xff]
    %v777 = vld [vmem:[#allocation17 + $0xe8] sm:$0xff]
    %v778 = vld [vmem:[#allocation17 + $0xf0] sm:$0xff]
    %v779 = vld [vmem:[#allocation17 + $0xf8] sm:$0xff]
    %v780 = vld [vmem:[#allocation17 + $0x100] sm:$0xff]
    %v781 = vld [vmem:[#allocation17 + $0x108] sm:$0xff]
    %v782 = vld [vmem:[#allocation17 + $0x110] sm:$0xff]
    %v783 = vld [vmem:[#allocation17 + $0x118] sm:$0xff]
    %v784 = vld [vmem:[#allocation17 + $0x120] sm:$0xff]
    %v785 = vld [vmem:[#allocation17 + $0x128] sm:$0xff]
    %v786 = vld [vmem:[#allocation17 + $0x130] sm:$0xff]
    %v787 = vld [vmem:[#allocation17 + $0x138] sm:$0xff]
    %v788 = vld [vmem:[#allocation17 + $0x140] sm:$0xff]
    %v789 = vld [vmem:[#allocation17 + $0x148] sm:$0xff]
    %v790 = vld [vmem:[#allocation17 + $0x150] sm:$0xff]
    %v791 = vld [vmem:[#allocation17 + $0x158] sm:$0xff]
    %v792 = vld [vmem:[#allocation17 + $0x160] sm:$0xff]
    %v793 = vld [vmem:[#allocation17 + $0x168] sm:$0xff]
    %v794 = vld [vmem:[#allocation17 + $0x170] sm:$0xff]
    %v795 = vld [vmem:[#allocation17 + $0x178] sm:$0xff]
    %v796 = vld [vmem:[#allocation17 + $0x180] sm:$0xff]
    %v797 = vld [vmem:[#allocation17 + $0x188] sm:$0xff]
    %v798 = vld [vmem:[#allocation17 + $0x190] sm:$0xff]
    %v799 = vld [vmem:[#allocation17 + $0x198] sm:$0xff]
    %v800 = vld [vmem:[#allocation17 + $0x1a0] sm:$0xff]
    %v801 = vld [vmem:[#allocation17 + $0x1a8] sm:$0xff]
    %v802 = vld [vmem:[#allocation17 + $0x1b0] sm:$0xff]
    %v803 = vld [vmem:[#allocation17 + $0x1b8] sm:$0xff]
    %v804 = vld [vmem:[#allocation17 + $0x1c0] sm:$0xff]
    %v805 = vld [vmem:[#allocation17 + $0x1c8] sm:$0xff]
    %v806 = vld [vmem:[#allocation17 + $0x1d0] sm:$0xff]
    %v807 = vld [vmem:[#allocation17 + $0x1d8] sm:$0xff]
    %v808 = vld [vmem:[#allocation17 + $0x1e0] sm:$0xff]
    %v809 = vld [vmem:[#allocation17 + $0x1e8] sm:$0xff]
    %v810 = vld [vmem:[#allocation17 + $0x1f0] sm:$0xff]
    %v811 = vld [vmem:[#allocation17 + $0x1f8] sm:$0xff]
    %v812 = vld [vmem:[#allocation17 + $0x200] sm:$0xff]
    %v813 = vld [vmem:[#allocation17 + $0x208] sm:$0xff]
    %v814 = vld [vmem:[#allocation17 + $0x210] sm:$0xff]
    %v815 = vld [vmem:[#allocation17 + $0x218] sm:$0xff]
    %v816 = vld [vmem:[#allocation17 + $0x220] sm:$0xff]
    %v817 = vld [vmem:[#allocation17 + $0x228] sm:$0xff]
    %v818 = vld [vmem:[#allocation17 + $0x230] sm:$0xff]
    %v819 = vld [vmem:[#allocation17 + $0x238] sm:$0xff]
    %v820 = vld [vmem:[#allocation17 + $0x240] sm:$0xff]
    %v821 = vld [vmem:[#allocation17 + $0x248] sm:$0xff]
    %v822 = vld [vmem:[#allocation17 + $0x250] sm:$0xff]
    %v823 = vld [vmem:[#allocation17 + $0x258] sm:$0xff]
    %v824 = vld [vmem:[#allocation17 + $0x260] sm:$0xff]
    %v825 = vld [vmem:[#allocation17 + $0x268] sm:$0xff]
    %v826 = vld [vmem:[#allocation17 + $0x270] sm:$0xff]
    %v827 = vld [vmem:[#allocation17 + $0x278] sm:$0xff]
    %v828 = vld [vmem:[#allocation17 + $0x280] sm:$0xff]
    %v829 = vld [vmem:[#allocation17 + $0x288] sm:$0xff]
    %v830 = vld [vmem:[#allocation17 + $0x290] sm:$0xff]
    %v831 = vld [vmem:[#allocation17 + $0x298] sm:$0xff]
    %v832 = vld [vmem:[#allocation17 + $0x2a0] sm:$0xff]
    %v833 = vld [vmem:[#allocation17 + $0x2a8] sm:$0xff]
    %v834 = vld [vmem:[#allocation17 + $0x2b0] sm:$0xff]
    %v835 = vld [vmem:[#allocation17 + $0x2b8] sm:$0xff]
    %v836 = vld [vmem:[#allocation17 + $0x2c0] sm:$0xff]
    %v837 = vld [vmem:[#allocation17 + $0x2c8] sm:$0xff]
    %v838 = vld [vmem:[#allocation17 + $0x2d0] sm:$0xff]
    %v839 = vld [vmem:[#allocation17 + $0x2d8] sm:$0xff]
    %v840 = vld [vmem:[#allocation17 + $0x2e0] sm:$0xff]
    %v841 = vld [vmem:[#allocation17 + $0x2e8] sm:$0xff]
    %v842 = vld [vmem:[#allocation17 + $0x2f0] sm:$0xff]
    %v843 = vld [vmem:[#allocation17 + $0x2f8] sm:$0xff]
    %v844 = vld [vmem:[#allocation17 + $0x300] sm:$0xff]
    %v845 = vld [vmem:[#allocation17 + $0x308] sm:$0xff]
    %v846 = vld [vmem:[#allocation17 + $0x310] sm:$0xff]
    %v847 = vld [vmem:[#allocation17 + $0x318] sm:$0xff]
    %v848 = vld [vmem:[#allocation17 + $0x320] sm:$0xff]
    %v849 = vld [vmem:[#allocation17 + $0x328] sm:$0xff]
    %v850 = vld [vmem:[#allocation17 + $0x330] sm:$0xff]
    %v851 = vld [vmem:[#allocation17 + $0x338] sm:$0xff]
    %v852 = vld [vmem:[#allocation17 + $0x340] sm:$0xff]
    %v853 = vld [vmem:[#allocation17 + $0x348] sm:$0xff]
    %v854 = vld [vmem:[#allocation17 + $0x350] sm:$0xff]
    %v855 = vld [vmem:[#allocation17 + $0x358] sm:$0xff]
    %v856 = vld [vmem:[#allocation17 + $0x360] sm:$0xff]
    %v857 = vld [vmem:[#allocation17 + $0x368] sm:$0xff]
    %v858 = vld [vmem:[#allocation17 + $0x370] sm:$0xff]
    %v859 = vld [vmem:[#allocation17 + $0x378] sm:$0xff]
    %v860 = vld [vmem:[#allocation17 + $0x380] sm:$0xff]
    %v861 = vld [vmem:[#allocation17 + $0x388] sm:$0xff]
    %v862 = vld [vmem:[#allocation17 + $0x390] sm:$0xff]
    %v863 = vld [vmem:[#allocation17 + $0x398] sm:$0xff]
    %v864 = vld [vmem:[#allocation17 + $0x3a0] sm:$0xff]
    %v865 = vld [vmem:[#allocation17 + $0x3a8] sm:$0xff]
    %v866 = vld [vmem:[#allocation17 + $0x3b0] sm:$0xff]
    %v867 = vld [vmem:[#allocation17 + $0x3b8] sm:$0xff]
    %v868 = vld [vmem:[#allocation17 + $0x3c0] sm:$0xff]
    %v869 = vld [vmem:[#allocation17 + $0x3c8] sm:$0xff]
    %v870 = vld [vmem:[#allocation17 + $0x3d0] sm:$0xff]
    %v871 = vld [vmem:[#allocation17 + $0x3d8] sm:$0xff]
    %v872 = vld [vmem:[#allocation17 + $0x3e0] sm:$0xff]
    %v873 = vld [vmem:[#allocation17 + $0x3e8] sm:$0xff]
    %v874 = vld [vmem:[#allocation17 + $0x3f0] sm:$0xff]
    %v875 = vld [vmem:[#allocation17 + $0x3f8] sm:$0xff]
    %v876 = vld [vmem:[#allocation6] sm:$0x3]
    %v877 = vld [vmem:[%s11] sm:$0xff]
    %v878 = vld [vmem:[%s11 + $0x8] sm:$0xff]
    %v879 = vld [vmem:[%s11 + $0x10] sm:$0xf]
    %vm880 = vcmask 162816
    %v882 = vsel %vm880, %v876, 0
    %vm884 = vcmask 1043456
    %v886 = vsel %vm884, %v879, 0
    %888 = vmatprep.subr.mxu0 0.0
    %889 = vmatpush1.msra.mxu0 %v877
    %890 = vmatprep.subr.mxu0 0.0
    %891 = vmatpush1.msra.mxu0 %v878
    %892 = vmatprep.subr.mxu0 0.0
    %893 = vmatpush1.msra.mxu0 %v886
    %894 = vmatprep.subr.mxu0 0.0
    %895 = vmatpush1.msra.mxu0 0.0
    %896 = vmatprep.subr.mxu0 0.0
    %897 = vmatpush1.msra.mxu0 0.0
    %898 = vmatprep.subr.mxu0 0.0
    %899 = vmatpush1.msra.mxu0 0.0
    %900 = vmatprep.subr.mxu0 0.0
    %901 = vmatpush1.msra.mxu0 0.0
    %902 = vmatprep.subr.mxu0 0.0
    %903 = vmatpush1.msra.mxu0 0.0
    %904 = vmatprep.subr.mxu0 0.0
    %905 = vmatpush1.msra.mxu0 0.0
    %906 = vmatprep.subr.mxu0 0.0
    %907 = vmatpush1.msra.mxu0 0.0
    %908 = vmatprep.subr.mxu0 0.0
    %909 = vmatpush1.msra.mxu0 0.0
    %910 = vmatprep.subr.mxu0 0.0
    %911 = vmatpush1.msra.mxu0 0.0
    %912 = vmatprep.subr.mxu0 0.0
    %913 = vmatpush1.msra.mxu0 0.0
    %914 = vmatprep.subr.mxu0 0.0
    %915 = vmatpush1.msra.mxu0 0.0
    %916 = vmatprep.subr.mxu0 0.0
    %917 = vmatpush1.msra.mxu0 0.0
    %918 = vmatprep.subr.mxu0 0.0
    %919 = vmatpush1.msra.mxu0 0.0
    %920 = vmatprep.subr.mxu0 0.0
    %921 = vmatpush1.msra.mxu0 0.0
    %922 = vmatprep.subr.mxu0 0.0
    %923 = vmatpush1.msra.mxu0 0.0
    %924 = vmatprep.subr.mxu0 0.0
    %925 = vmatpush1.msra.mxu0 0.0
    %926 = vmatprep.subr.mxu0 0.0
    %927 = vmatpush1.msra.mxu0 0.0
    %928 = vmatprep.subr.mxu0 0.0
    %929 = vmatpush1.msra.mxu0 0.0
    %930 = vmatprep.subr.mxu0 0.0
    %931 = vmatpush1.msra.mxu0 0.0
    %932 = vmatprep.subr.mxu0 0.0
    %933 = vmatpush1.msra.mxu0 0.0
    %934 = vmatprep.subr.mxu0 0.0
    %935 = vmatpush1.msra.mxu0 0.0
    %936 = vmatprep.subr.mxu0 0.0
    %937 = vmatpush1.msra.mxu0 0.0
    %938 = vmatprep.subr.mxu0 0.0
    %939 = vmatpush1.msra.mxu0 0.0
    %940 = vmatprep.subr.mxu0 0.0
    %941 = vmatpush1.msra.mxu0 0.0
    %942 = vmatprep.subr.mxu0 0.0
    %943 = vmatpush1.msra.mxu0 0.0
    %944 = vmatprep.subr.mxu0 0.0
    %945 = vmatpush1.msra.mxu0 0.0
    %946 = vmatprep.subr.mxu0 0.0
    %947 = vmatpush1.msra.mxu0 0.0
    %948 = vmatprep.subr.mxu0 0.0
    %949 = vmatpush1.msra.mxu0 0.0
    %950 = vmatprep.subr.mxu0 0.0
    %951 = vmatpush1.msra.mxu0 0.0
    %952 = vmatprep.mubr.f32.mxu0 0.0
    %953 = vmatmul.mubr.f32.gmra.mrb[0].mxu0 %v882
    %v954 = vpop.f32.mrb[0].mxu0
    %v955 = vadd.f32 0.0, %v954
    %v956 = vpop.f32.mrb[0].mxu0
    %957 = vdwg.mxu0
    %v960 = vcombine.high %v746, %v746
    %v962 = vunpack.c.l.s4 1983009808
    %v963 = vunpack.c.0.s8 %v962
    %v964 = vlaneseq
    %v965 = vshrl.u32 %v964, 7
    %v966 = vsub.s32 %v963, %v965
    %v967 = vrot.slane %v746, %v966
    %v969 = vunpack.c.l.s4 1983009808
    %v970 = vunpack.c.0.s8 %v969
    %v971 = vlaneseq
    %v972 = vshrl.u32 %v971, 7
    %v973 = vsub.s32 %v970, %v972
    %v974 = vrot.slane %v960, %v973
    %v975 = vcombine.high %v967, %v967
    %v976 = vcombine.high %v974, %v974
    %v977 = vcombine.high %v747, %v747
    %v979 = vunpack.c.l.s4 1983009808
    %v980 = vunpack.c.0.s8 %v979
    %v981 = vlaneseq
    %v982 = vshrl.u32 %v981, 7
    %v983 = vsub.s32 %v980, %v982
    %v984 = vrot.slane %v747, %v983
    %v986 = vunpack.c.l.s4 1983009808
    %v987 = vunpack.c.0.s8 %v986
    %v988 = vlaneseq
    %v989 = vshrl.u32 %v988, 7
    %v990 = vsub.s32 %v987, %v989
    %v991 = vrot.slane %v977, %v990
    %v992 = vcombine.high %v984, %v984
    %v993 = vcombine.high %v991, %v991
    %1002 = vmatprep.subr.mxu0 0.0
    %1003 = vmatpush1.msra.mxu0 %v748
    %1004 = vmatprep.subr.mxu0 0.0
    %1005 = vmatpush1.msra.mxu0 %v749
    %1006 = vmatprep.subr.mxu0 0.0
    %1007 = vmatpush1.msra.mxu0 %v750
    %1008 = vmatprep.subr.mxu0 0.0
    %1009 = vmatpush1.msra.mxu0 %v751
    %1010 = vmatprep.subr.mxu0 0.0
    %1011 = vmatpush1.msra.mxu0 %v752
    %1012 = vmatprep.subr.mxu0 0.0
    %1013 = vmatpush1.msra.mxu0 %v753
    %1014 = vmatprep.subr.mxu0 0.0
    %1015 = vmatpush1.msra.mxu0 %v754
    %1016 = vmatprep.subr.mxu0 0.0
    %1017 = vmatpush1.msra.mxu0 %v755
    %1018 = vmatprep.subr.mxu0 0.0
    %1019 = vmatpush1.msra.mxu0 %v756
    %1020 = vmatprep.subr.mxu0 0.0
    %1021 = vmatpush1.msra.mxu0 %v757
    %1022 = vmatprep.subr.mxu0 0.0
    %1023 = vmatpush1.msra.mxu0 %v758
    %1024 = vmatprep.subr.mxu0 0.0
    %1025 = vmatpush1.msra.mxu0 %v759
    %1026 = vmatprep.subr.mxu0 0.0
    %1027 = vmatpush1.msra.mxu0 %v760
    %1028 = vmatprep.subr.mxu0 0.0
    %1029 = vmatpush1.msra.mxu0 %v761
    %1030 = vmatprep.subr.mxu0 0.0
    %1031 = vmatpush1.msra.mxu0 %v762
    %1032 = vmatprep.subr.mxu0 0.0
    %1033 = vmatpush1.msra.mxu0 %v763
    %1034 = vmatprep.subr.mxu0 0.0
    %1035 = vmatpush1.msra.mxu0 %v764
    %1036 = vmatprep.subr.mxu0 0.0
    %1037 = vmatpush1.msra.mxu0 %v765
    %1038 = vmatprep.subr.mxu0 0.0
    %1039 = vmatpush1.msra.mxu0 %v766
    %1040 = vmatprep.subr.mxu0 0.0
    %1041 = vmatpush1.msra.mxu0 %v767
    %1042 = vmatprep.subr.mxu0 0.0
    %1043 = vmatpush1.msra.mxu0 %v768
    %1044 = vmatprep.subr.mxu0 0.0
    %1045 = vmatpush1.msra.mxu0 %v769
    %1046 = vmatprep.subr.mxu0 0.0
    %1047 = vmatpush1.msra.mxu0 %v770
    %1048 = vmatprep.subr.mxu0 0.0
    %1049 = vmatpush1.msra.mxu0 %v771
    %1050 = vmatprep.subr.mxu0 0.0
    %1051 = vmatpush1.msra.mxu0 %v772
    %1052 = vmatprep.subr.mxu0 0.0
    %1053 = vmatpush1.msra.mxu0 %v773
    %1054 = vmatprep.subr.mxu0 0.0
    %1055 = vmatpush1.msra.mxu0 %v774
    %1056 = vmatprep.subr.mxu0 0.0
    %1057 = vmatpush1.msra.mxu0 %v775
    %1058 = vmatprep.subr.mxu0 0.0
    %1059 = vmatpush1.msra.mxu0 %v776
    %1060 = vmatprep.subr.mxu0 0.0
    %1061 = vmatpush1.msra.mxu0 %v777
    %1062 = vmatprep.subr.mxu0 0.0
    %1063 = vmatpush1.msra.mxu0 %v778
    %1064 = vmatprep.subr.mxu0 0.0
    %1065 = vmatpush1.msra.mxu0 %v779
    %1066 = vmatprep.mubr.f32.mxu0 %v975
    %1067 = vmatmul.mubr.f32.gmra.mrb[0].mxu0 %v967
    %v1068 = vpop.f32.mrb[0].mxu0
    %v1069 = vadd.f32 %v955, %v1068
    %v1070 = vpop.f32.mrb[0].mxu0
    %1071 = vdwg.mxu0
    %1072 = vmatprep.subr.mxu0 0.0
    %1073 = vmatpush1.msra.mxu0 %v780
    %1074 = vmatprep.subr.mxu0 0.0
    %1075 = vmatpush1.msra.mxu0 %v781
    %1076 = vmatprep.subr.mxu0 0.0
    %1077 = vmatpush1.msra.mxu0 %v782
    %1078 = vmatprep.subr.mxu0 0.0
    %1079 = vmatpush1.msra.mxu0 %v783
    %1080 = vmatprep.subr.mxu0 0.0
    %1081 = vmatpush1.msra.mxu0 %v784
    %1082 = vmatprep.subr.mxu0 0.0
    %1083 = vmatpush1.msra.mxu0 %v785
    %1084 = vmatprep.subr.mxu0 0.0
    %1085 = vmatpush1.msra.mxu0 %v786
    %1086 = vmatprep.subr.mxu0 0.0
    %1087 = vmatpush1.msra.mxu0 %v787
    %1088 = vmatprep.subr.mxu0 0.0
    %1089 = vmatpush1.msra.mxu0 %v788
    %1090 = vmatprep.subr.mxu0 0.0
    %1091 = vmatpush1.msra.mxu0 %v789
    %1092 = vmatprep.subr.mxu0 0.0
    %1093 = vmatpush1.msra.mxu0 %v790
    %1094 = vmatprep.subr.mxu0 0.0
    %1095 = vmatpush1.msra.mxu0 %v791
    %1096 = vmatprep.subr.mxu0 0.0
    %1097 = vmatpush1.msra.mxu0 %v792
    %1098 = vmatprep.subr.mxu0 0.0
    %1099 = vmatpush1.msra.mxu0 %v793
    %1100 = vmatprep.subr.mxu0 0.0
    %1101 = vmatpush1.msra.mxu0 %v794
    %1102 = vmatprep.subr.mxu0 0.0
    %1103 = vmatpush1.msra.mxu0 %v795
    %1104 = vmatprep.subr.mxu0 0.0
    %1105 = vmatpush1.msra.mxu0 %v796
    %1106 = vmatprep.subr.mxu0 0.0
    %1107 = vmatpush1.msra.mxu0 %v797
    %1108 = vmatprep.subr.mxu0 0.0
    %1109 = vmatpush1.msra.mxu0 %v798
    %1110 = vmatprep.subr.mxu0 0.0
    %1111 = vmatpush1.msra.mxu0 %v799
    %1112 = vmatprep.subr.mxu0 0.0
    %1113 = vmatpush1.msra.mxu0 %v800
    %1114 = vmatprep.subr.mxu0 0.0
    %1115 = vmatpush1.msra.mxu0 %v801
    %1116 = vmatprep.subr.mxu0 0.0
    %1117 = vmatpush1.msra.mxu0 %v802
    %1118 = vmatprep.subr.mxu0 0.0
    %1119 = vmatpush1.msra.mxu0 %v803
    %1120 = vmatprep.subr.mxu0 0.0
    %1121 = vmatpush1.msra.mxu0 %v804
    %1122 = vmatprep.subr.mxu0 0.0
    %1123 = vmatpush1.msra.mxu0 %v805
    %1124 = vmatprep.subr.mxu0 0.0
    %1125 = vmatpush1.msra.mxu0 %v806
    %1126 = vmatprep.subr.mxu0 0.0
    %1127 = vmatpush1.msra.mxu0 %v807
    %1128 = vmatprep.subr.mxu0 0.0
    %1129 = vmatpush1.msra.mxu0 %v808
    %1130 = vmatprep.subr.mxu0 0.0
    %1131 = vmatpush1.msra.mxu0 %v809
    %1132 = vmatprep.subr.mxu0 0.0
    %1133 = vmatpush1.msra.mxu0 %v810
    %1134 = vmatprep.subr.mxu0 0.0
    %1135 = vmatpush1.msra.mxu0 %v811
    %1136 = vmatprep.mubr.f32.mxu0 %v976
    %1137 = vmatmul.mubr.f32.gmra.mrb[0].mxu0 %v974
    %v1138 = vpop.f32.mrb[0].mxu0
    %v1139 = vadd.f32 %v1069, %v1138
    %v1140 = vpop.f32.mrb[0].mxu0
    %1141 = vdwg.mxu0
    %1142 = vmatprep.subr.mxu0 0.0
    %1143 = vmatpush1.msra.mxu0 %v812
    %1144 = vmatprep.subr.mxu0 0.0
    %1145 = vmatpush1.msra.mxu0 %v813
    %1146 = vmatprep.subr.mxu0 0.0
    %1147 = vmatpush1.msra.mxu0 %v814
    %1148 = vmatprep.subr.mxu0 0.0
    %1149 = vmatpush1.msra.mxu0 %v815
    %1150 = vmatprep.subr.mxu0 0.0
    %1151 = vmatpush1.msra.mxu0 %v816
    %1152 = vmatprep.subr.mxu0 0.0
    %1153 = vmatpush1.msra.mxu0 %v817
    %1154 = vmatprep.subr.mxu0 0.0
    %1155 = vmatpush1.msra.mxu0 %v818
    %1156 = vmatprep.subr.mxu0 0.0
    %1157 = vmatpush1.msra.mxu0 %v819
    %1158 = vmatprep.subr.mxu0 0.0
    %1159 = vmatpush1.msra.mxu0 %v820
    %1160 = vmatprep.subr.mxu0 0.0
    %1161 = vmatpush1.msra.mxu0 %v821
    %1162 = vmatprep.subr.mxu0 0.0
    %1163 = vmatpush1.msra.mxu0 %v822
    %1164 = vmatprep.subr.mxu0 0.0
    %1165 = vmatpush1.msra.mxu0 %v823
    %1166 = vmatprep.subr.mxu0 0.0
    %1167 = vmatpush1.msra.mxu0 %v824
    %1168 = vmatprep.subr.mxu0 0.0
    %1169 = vmatpush1.msra.mxu0 %v825
    %1170 = vmatprep.subr.mxu0 0.0
    %1171 = vmatpush1.msra.mxu0 %v826
    %1172 = vmatprep.subr.mxu0 0.0
    %1173 = vmatpush1.msra.mxu0 %v827
    %1174 = vmatprep.subr.mxu0 0.0
    %1175 = vmatpush1.msra.mxu0 %v828
    %1176 = vmatprep.subr.mxu0 0.0
    %1177 = vmatpush1.msra.mxu0 %v829
    %1178 = vmatprep.subr.mxu0 0.0
    %1179 = vmatpush1.msra.mxu0 %v830
    %1180 = vmatprep.subr.mxu0 0.0
    %1181 = vmatpush1.msra.mxu0 %v831
    %1182 = vmatprep.subr.mxu0 0.0
    %1183 = vmatpush1.msra.mxu0 %v832
    %1184 = vmatprep.subr.mxu0 0.0
    %1185 = vmatpush1.msra.mxu0 %v833
    %1186 = vmatprep.subr.mxu0 0.0
    %1187 = vmatpush1.msra.mxu0 %v834
    %1188 = vmatprep.subr.mxu0 0.0
    %1189 = vmatpush1.msra.mxu0 %v835
    %1190 = vmatprep.subr.mxu0 0.0
    %1191 = vmatpush1.msra.mxu0 %v836
    %1192 = vmatprep.subr.mxu0 0.0
    %1193 = vmatpush1.msra.mxu0 %v837
    %1194 = vmatprep.subr.mxu0 0.0
    %1195 = vmatpush1.msra.mxu0 %v838
    %1196 = vmatprep.subr.mxu0 0.0
    %1197 = vmatpush1.msra.mxu0 %v839
    %1198 = vmatprep.subr.mxu0 0.0
    %1199 = vmatpush1.msra.mxu0 %v840
    %1200 = vmatprep.subr.mxu0 0.0
    %1201 = vmatpush1.msra.mxu0 %v841
    %1202 = vmatprep.subr.mxu0 0.0
    %1203 = vmatpush1.msra.mxu0 %v842
    %1204 = vmatprep.subr.mxu0 0.0
    %1205 = vmatpush1.msra.mxu0 %v843
    %1206 = vmatprep.mubr.f32.mxu0 %v992
    %1207 = vmatmul.mubr.f32.gmra.mrb[0].mxu0 %v984
    %v1208 = vpop.f32.mrb[0].mxu0
    %v1209 = vadd.f32 %v1139, %v1208
    %v1210 = vpop.f32.mrb[0].mxu0
    %1211 = vdwg.mxu0
    %1212 = vmatprep.subr.mxu0 0.0
    %1213 = vmatpush1.msra.mxu0 %v844
    %1214 = vmatprep.subr.mxu0 0.0
    %1215 = vmatpush1.msra.mxu0 %v845
    %1216 = vmatprep.subr.mxu0 0.0
    %1217 = vmatpush1.msra.mxu0 %v846
    %1218 = vmatprep.subr.mxu0 0.0
    %1219 = vmatpush1.msra.mxu0 %v847
    %1220 = vmatprep.subr.mxu0 0.0
    %1221 = vmatpush1.msra.mxu0 %v848
    %1222 = vmatprep.subr.mxu0 0.0
    %1223 = vmatpush1.msra.mxu0 %v849
    %1224 = vmatprep.subr.mxu0 0.0
    %1225 = vmatpush1.msra.mxu0 %v850
    %1226 = vmatprep.subr.mxu0 0.0
    %1227 = vmatpush1.msra.mxu0 %v851
    %1228 = vmatprep.subr.mxu0 0.0
    %1229 = vmatpush1.msra.mxu0 %v852
    %1230 = vmatprep.subr.mxu0 0.0
    %1231 = vmatpush1.msra.mxu0 %v853
    %1232 = vmatprep.subr.mxu0 0.0
    %1233 = vmatpush1.msra.mxu0 %v854
    %1234 = vmatprep.subr.mxu0 0.0
    %1235 = vmatpush1.msra.mxu0 %v855
    %1236 = vmatprep.subr.mxu0 0.0
    %1237 = vmatpush1.msra.mxu0 %v856
    %1238 = vmatprep.subr.mxu0 0.0
    %1239 = vmatpush1.msra.mxu0 %v857
    %1240 = vmatprep.subr.mxu0 0.0
    %1241 = vmatpush1.msra.mxu0 %v858
    %1242 = vmatprep.subr.mxu0 0.0
    %1243 = vmatpush1.msra.mxu0 %v859
    %1244 = vmatprep.subr.mxu0 0.0
    %1245 = vmatpush1.msra.mxu0 %v860
    %1246 = vmatprep.subr.mxu0 0.0
    %1247 = vmatpush1.msra.mxu0 %v861
    %1248 = vmatprep.subr.mxu0 0.0
    %1249 = vmatpush1.msra.mxu0 %v862
    %1250 = vmatprep.subr.mxu0 0.0
    %1251 = vmatpush1.msra.mxu0 %v863
    %1252 = vmatprep.subr.mxu0 0.0
    %1253 = vmatpush1.msra.mxu0 %v864
    %1254 = vmatprep.subr.mxu0 0.0
    %1255 = vmatpush1.msra.mxu0 %v865
    %1256 = vmatprep.subr.mxu0 0.0
    %1257 = vmatpush1.msra.mxu0 %v866
    %1258 = vmatprep.subr.mxu0 0.0
    %1259 = vmatpush1.msra.mxu0 %v867
    %1260 = vmatprep.subr.mxu0 0.0
    %1261 = vmatpush1.msra.mxu0 %v868
    %1262 = vmatprep.subr.mxu0 0.0
    %1263 = vmatpush1.msra.mxu0 %v869
    %1264 = vmatprep.subr.mxu0 0.0
    %1265 = vmatpush1.msra.mxu0 %v870
    %1266 = vmatprep.subr.mxu0 0.0
    %1267 = vmatpush1.msra.mxu0 %v871
    %1268 = vmatprep.subr.mxu0 0.0
    %1269 = vmatpush1.msra.mxu0 %v872
    %1270 = vmatprep.subr.mxu0 0.0
    %1271 = vmatpush1.msra.mxu0 %v873
    %1272 = vmatprep.subr.mxu0 0.0
    %1273 = vmatpush1.msra.mxu0 %v874
    %1274 = vmatprep.subr.mxu0 0.0
    %1275 = vmatpush1.msra.mxu0 %v875
    %1276 = vmatprep.mubr.f32.mxu0 %v993
    %1277 = vmatmul.mubr.f32.gmra.mrb[0].mxu0 %v991
    %v1278 = vpop.f32.mrb[0].mxu0
    %v1279 = vadd.f32 %v1209, %v1278
    %v1280 = vpop.f32.mrb[0].mxu0
    %1281 = vdwg.mxu0
    %v1282 = vld [vmem:[%s12] sm:$0x1]
    %v1284 = vlaneseq
    %v1285 = vshrl.u32 %v1284, 7
    %v1286 = vsub.s32 0, %v1285
    %v1287 = vrot.slane %v1282, %v1286
    %v1289 = vadd.f32 %v1279, %v1287
    %1290 = vst [vmem:[#allocation18] sm:$0x3] %v1289
    // Predicated region
    $region90: #{tpu_custom_call.1} parent=1 // pred_check
      _
    $region91: #{tpu_custom_call.1} parent=1 // pred_check_branch
      %1292 = sbr.rel (0) target = $region93
    $region92: #{tpu_custom_call.1} parent=1 // pred_region
      %s1294 = ssub.s32 32, 32
      %1295 = vsyncadd [#allocation5], %s1294
      %s1297 = sshll.u32 [#allocation18], 4
      %s1298 = int_to_ptr.vmem [resolvable:$true] %s1297
      %1300 = dma.vmem_to_hbm [thread:$0]  %s1298, 32, %s13, [#allocation5]
    $region93: #{tpu_custom_call.1} parent=1 // pred_fallthru
      _
    // Predicated region
    $region94: #{tpu_custom_call.1} parent=1 // pred_check
      _
    $region95: #{tpu_custom_call.1} parent=1 // pred_check_branch
      %1302 = sbr.rel (0) target = $region97
    $region96: #{tpu_custom_call.1} parent=1 // pred_region
      %1303 = dma.done [#allocation5], 32
    $region97: #{tpu_custom_call.1} parent=1 // pred_fallthru
      _
    %1304 = vsyncpa [#allocation4], 1
    %1305 = vsyncpa [#allocation7], 1
    %1306 = vsyncpa [#allocation10], 1
    %1307 = vsyncpa [#allocation13], 1
    %1308 = vsyncpa [#allocation16], 1
    %1309 = vsyncpa [#allocation5], 1

</llo_original>
